<compile_context>
chip_gen: v7x
topology: tpu7x:2x2x1
jax: 0.10.0
libtpu: 0.0.40
codegen_flags: <defaults>
</compile_context>

<pallas_src>
import numpy as np
import jax
import jax.numpy as jnp
from jax.experimental import pallas as pl
from jax.experimental.pallas import tpu as pltpu


COUT_PAD = 128  # pad the classifier head to a full lane width for dense stores


# ----------------------------------------------------------------------------
# Fused Pallas kernel: per-image  im2col -> conv matmul -> bias -> ReLU
#                      -> global average pool -> linear head (padded to 128)
# ----------------------------------------------------------------------------

def _fused_cnn_kernel(x_ref, wconv_ref, bconv_ref, wfc_ref, bfc_ref, o_ref):
    """One grid step == one image.

    x_ref     : (1, Hp, Wp, Cin)   zero-padded NHWC image tile (Hp=H+2, Wp=W+2)
    wconv_ref : (9*Cin, Cmid)      conv weight, feature order (kh, kw, ci)
    bconv_ref : (1, Cmid)
    wfc_ref   : (Cmid, COUT_PAD)   fc weight, zero-padded along lanes
    bfc_ref   : (1, COUT_PAD)      fc bias, zero-padded along lanes
    o_ref     : (1, 1, COUT_PAD)
    """
    _, Hp, Wp, Cin = x_ref.shape
    H, W = Hp - 2, Wp - 2

    x = x_ref[0]                                            # (Hp, Wp, Cin) in VMEM

    # In-kernel im2col: 9 shifted slices of the resident tile, concatenated on
    # the feature (lane) axis.  No HBM blowup, no XLA transpose.
    taps = [x[kh:kh + H, kw:kw + W, :] for kh in range(3) for kw in range(3)]
    patches = jnp.concatenate(taps, axis=-1)                # (H, W, 9*Cin)
    patches = patches.reshape(H * W, 9 * Cin)               # (HW, 9*Cin)

    # Conv as a single matmul + bias + ReLU (f32 accumulate on the MXU).
    feat = jnp.dot(patches, wconv_ref[...],
                   preferred_element_type=jnp.float32)      # (HW, Cmid)
    feat = jnp.maximum(feat + bconv_ref[...], 0.0)

    # Global average pool folded into the same pass (stays in VMEM).
    pooled = jnp.sum(feat, axis=0, keepdims=True) * (1.0 / (H * W))   # (1, Cmid)

    # Linear head into a lane-dense (1, 128) row; padding lanes carry zeros.
    out = jnp.dot(pooled, wfc_ref[...],
                  preferred_element_type=jnp.float32) + bfc_ref[...]  # (1, COUT_PAD)
    o_ref[0] = out


def fused_cnn_forward(xp_nhwc, w_conv_mat, b_conv, w_fc_pad, b_fc_pad):
    """xp_nhwc: (N, H+2, W+2, Cin) zero-padded input. Returns (N, COUT_PAD)."""
    N, Hp, Wp, Cin = xp_nhwc.shape
    K, Cmid = w_conv_mat.shape

    out = pl.pallas_call(
        _fused_cnn_kernel,
        out_shape=jax.ShapeDtypeStruct((N, 1, COUT_PAD), jnp.float32),
        grid=(N,),
        in_specs=[
            pl.BlockSpec((1, Hp, Wp, Cin), lambda b: (b, 0, 0, 0)),
            pl.BlockSpec((K, Cmid), lambda b: (0, 0)),
            pl.BlockSpec((1, Cmid), lambda b: (0, 0)),
            pl.BlockSpec((Cmid, COUT_PAD), lambda b: (0, 0)),
            pl.BlockSpec((1, COUT_PAD), lambda b: (0, 0)),
        ],
        out_specs=pl.BlockSpec((1, 1, COUT_PAD), lambda b: (b, 0, 0)),
        compiler_params=pltpu.CompilerParams(
            dimension_semantics=("parallel",),      # shard batch across TCs (v7x)
            vmem_limit_bytes=64 * 1024 * 1024,
        ),
    )(xp_nhwc, w_conv_mat, b_conv, w_fc_pad, b_fc_pad)
    return out.reshape(N, COUT_PAD)


# ----------------------------------------------------------------------------
# Wrapped model (conv3x3 + ReLU + GAP + Linear), parameters hoisted in __init__
# ----------------------------------------------------------------------------

class WrappedCNN:
    def __init__(self, cin=4, cmid=8, cout=10, key=jax.random.PRNGKey(0)):
        k1, k2, k3, k4 = jax.random.split(key, 4)
        # PyTorch layouts.
        self.conv_w = jax.random.normal(k1, (cmid, cin, 3, 3), jnp.float32) * 0.1
        self.conv_b = jax.random.normal(k2, (cmid,), jnp.float32) * 0.1
        self.fc_w = jax.random.normal(k3, (cout, cmid), jnp.float32) * 0.1
        self.fc_b = jax.random.normal(k4, (cout,), jnp.float32) * 0.1
        self.cin, self.cmid, self.cout = cin, cmid, cout

        # Hoisted kernel-ready parameters (computed once, not per forward).
        # Conv weight (Cmid, Cin, 3, 3) -> (kh, kw, ci, co) -> (9*Cin, Cmid),
        # matching the in-kernel tap concatenation order (kh major, kw, ci).
        self._w_conv_mat = jnp.transpose(self.conv_w, (2, 3, 1, 0)).reshape(
            9 * cin, cmid)
        self._b_conv = self.conv_b.reshape(1, cmid)
        # Linear head zero-padded to 128 output lanes for unmasked stores.
        self._w_fc_pad = jnp.zeros((cmid, COUT_PAD), jnp.float32).at[
            :, :cout].set(self.fc_w.T)
        self._b_fc_pad = jnp.zeros((1, COUT_PAD), jnp.float32).at[
            0, :cout].set(self.fc_b)

        self._forward = jax.jit(self._forward_impl)

    def _forward_impl(self, x_nchw):
        # NCHW (PyTorch convention) -> NHWC, spatial zero-pad for the 3x3 conv.
        x_nhwc = jnp.transpose(x_nchw, (0, 2, 3, 1))
        xp = jnp.pad(x_nhwc, ((0, 0), (1, 1), (1, 1), (0, 0)))
        out_pad = fused_cnn_forward(xp, self._w_conv_mat, self._b_conv,
                                    self._w_fc_pad, self._b_fc_pad)
        return out_pad[:, :self.cout]

    def __call__(self, x_nchw):
        return self._forward(x_nchw)


# ----------------------------------------------------------------------------
# ModelWrapper equivalent (PyTorch forward semantics)
# ----------------------------------------------------------------------------

class ModelWrapper:
    def __init__(self, model, queue=None):
        self.model = model
        self.queue = queue

    def forward(self, x):
        if isinstance(x, (np.ndarray, list)):
            x = jnp.asarray(x, dtype=jnp.float32)
        elif isinstance(x, jnp.ndarray):
            x = x.astype(jnp.float32)
        else:
            raise TypeError(f"Unsupported input type {type(x)}")
        if x.ndim == 3:                      # CHW -> NCHW
            x = x[None, ...]
        out = self.model(x)
        out = self.process_output(out)
        if self.queue is not None:
            self.queue.put(np.asarray(jax.device_get(out)))
        return out

    def process_output(self, output):
        """Identity (base class behavior)."""
        return output

    __call__ = forward


# ----------------------------------------------------------------------------
# Pure-JAX reference for correctness checking
# ----------------------------------------------------------------------------

def _reference(x_nchw, conv_w, conv_b, fc_w, fc_b):
    y = jax.lax.conv_general_dilated(
        x_nchw, conv_w, window_strides=(1, 1), padding="SAME",
        dimension_numbers=("NCHW", "OIHW", "NCHW"),
        precision=jax.lax.Precision.HIGHEST)
    y = jnp.maximum(y + conv_b[None, :, None, None], 0.0)
    pooled = jnp.mean(y, axis=(2, 3))
    return jnp.dot(pooled, fc_w.T, precision=jax.lax.Precision.HIGHEST) + fc_b


# ----------------------------------------------------------------------------
# Demo
# ----------------------------------------------------------------------------

if __name__ == "__main__":
    key = jax.random.PRNGKey(0)
    k_in, k_model = jax.random.split(key)

    # Input: batch=2, channels=4, spatial=16x16 (NCHW, PyTorch convention).
    x = jax.random.normal(k_in, (2, 4, 16, 16), jnp.float32)

    model = WrappedCNN(cin=4, cmid=8, cout=10, key=k_model)
    wrapper = ModelWrapper(model)

    out = jax.block_until_ready(wrapper(x))
    assert out.shape == (2, 10) and out.dtype == jnp.float32

    ref = jax.block_until_ready(
        _reference(x, model.conv_w, model.conv_b, model.fc_w, model.fc_b))
    assert np.allclose(np.asarray(out), np.asarray(ref), rtol=1e-3, atol=1e-3), (
        np.max(np.abs(np.asarray(out) - np.asarray(ref))))

    # Also exercise the ndim==3 path (CHW numpy input -> unsqueezed to NCHW).
    out3 = jax.block_until_ready(wrapper(np.asarray(x[0])))
    assert out3.shape == (1, 10)

    print("KERNEL_OK")
</pallas_src>

<mosaic_0001>
module attributes {stable_mosaic.version = 11 : i64} {
  func.func @_fused_cnn_kernel(%arg0: i32, %arg1: memref<1x18x18x4xf32, #tpu.memory_space<vmem>>, %arg2: memref<36x8xf32, #tpu.memory_space<vmem>>, %arg3: memref<1x8xf32, #tpu.memory_space<vmem>>, %arg4: memref<8x128xf32, #tpu.memory_space<vmem>>, %arg5: memref<1x128xf32, #tpu.memory_space<vmem>>, %arg6: memref<1x1x128xf32, #tpu.memory_space<vmem>>) attributes {dimension_semantics = [#tpu.dimension_semantics<parallel>], iteration_bounds = array<i64: 2>, scalar_prefetch = 0 : i64, scratch_operands = 0 : i64, tpu.core_type = #tpu.core_type<tc>, window_params = [{transform_indices = @transform_0, window_bounds = array<i64: 1, 18, 18, 4>}, {pipeline_mode = #tpu.pipeline_mode<synchronous>, transform_indices = @transform_1, window_bounds = array<i64: 36, 8>}, {pipeline_mode = #tpu.pipeline_mode<synchronous>, transform_indices = @transform_2, window_bounds = array<i64: 1, 8>}, {pipeline_mode = #tpu.pipeline_mode<synchronous>, transform_indices = @transform_3, window_bounds = array<i64: 8, 128>}, {pipeline_mode = #tpu.pipeline_mode<synchronous>, transform_indices = @transform_4, window_bounds = array<i64: 1, 128>}, {transform_indices = @transform_5, window_bounds = array<i64: 1, 1, 128>}]} {
    %c0 = arith.constant 0 : index
    %c0_0 = arith.constant 0 : index
    %c0_1 = arith.constant 0 : index
    %c0_2 = arith.constant 0 : index
    %0 = vector.load %arg1[%c0, %c0_0, %c0_1, %c0_2] : memref<1x18x18x4xf32, #tpu.memory_space<vmem>>, vector<1x18x18x4xf32>
    %1 = vector.shape_cast %0 : vector<1x18x18x4xf32> to vector<18x18x4xf32>
    %2 = vector.extract_strided_slice %1 {offsets = [0, 0, 0], sizes = [16, 16, 4], strides = [1, 1, 1]} : vector<18x18x4xf32> to vector<16x16x4xf32>
    %3 = vector.extract_strided_slice %1 {offsets = [0, 1, 0], sizes = [16, 16, 4], strides = [1, 1, 1]} : vector<18x18x4xf32> to vector<16x16x4xf32>
    %4 = vector.extract_strided_slice %1 {offsets = [0, 2, 0], sizes = [16, 16, 4], strides = [1, 1, 1]} : vector<18x18x4xf32> to vector<16x16x4xf32>
    %5 = vector.extract_strided_slice %1 {offsets = [1, 0, 0], sizes = [16, 16, 4], strides = [1, 1, 1]} : vector<18x18x4xf32> to vector<16x16x4xf32>
    %6 = vector.extract_strided_slice %1 {offsets = [1, 1, 0], sizes = [16, 16, 4], strides = [1, 1, 1]} : vector<18x18x4xf32> to vector<16x16x4xf32>
    %7 = vector.extract_strided_slice %1 {offsets = [1, 2, 0], sizes = [16, 16, 4], strides = [1, 1, 1]} : vector<18x18x4xf32> to vector<16x16x4xf32>
    %8 = vector.extract_strided_slice %1 {offsets = [2, 0, 0], sizes = [16, 16, 4], strides = [1, 1, 1]} : vector<18x18x4xf32> to vector<16x16x4xf32>
    %9 = vector.extract_strided_slice %1 {offsets = [2, 1, 0], sizes = [16, 16, 4], strides = [1, 1, 1]} : vector<18x18x4xf32> to vector<16x16x4xf32>
    %10 = vector.extract_strided_slice %1 {offsets = [2, 2, 0], sizes = [16, 16, 4], strides = [1, 1, 1]} : vector<18x18x4xf32> to vector<16x16x4xf32>
    %11 = tpu.concatenate %2, %3, %4, %5, %6, %7, %8, %9, %10 in 2 : vector<16x16x4xf32>, vector<16x16x4xf32>, vector<16x16x4xf32>, vector<16x16x4xf32>, vector<16x16x4xf32>, vector<16x16x4xf32>, vector<16x16x4xf32>, vector<16x16x4xf32>, vector<16x16x4xf32> -> vector<16x16x36xf32>
    %12 = vector.shape_cast %11 : vector<16x16x36xf32> to vector<256x36xf32>
    %c0_3 = arith.constant 0 : index
    %c0_4 = arith.constant 0 : index
    %13 = vector.load %arg2[%c0_3, %c0_4] : memref<36x8xf32, #tpu.memory_space<vmem>>, vector<36x8xf32>
    %cst = arith.constant dense<0.000000e+00> : vector<256x8xf32>
    %14 = tpu.matmul %12, %13, %cst {dimension_numbers = #tpu.dot_dimension_numbers<[1], [0], [0], [1], [0, 0, 1, 1], [], []>} : vector<256x36xf32>, vector<36x8xf32>, vector<256x8xf32> -> vector<256x8xf32>
    %c0_5 = arith.constant 0 : index
    %c0_6 = arith.constant 0 : index
    %15 = vector.load %arg3[%c0_5, %c0_6] : memref<1x8xf32, #tpu.memory_space<vmem>>, vector<1x8xf32>
    %16 = vector.broadcast %15 : vector<1x8xf32> to vector<256x8xf32>
    %17 = arith.addf %14, %16 : vector<256x8xf32>
    %cst_7 = arith.constant 0.000000e+00 : f32
    %18 = vector.broadcast %cst_7 : f32 to vector<256x8xf32>
    %19 = arith.maximumf %17, %18 : vector<256x8xf32>
    %cst_8 = arith.constant dense<0.000000e+00> : vector<8xf32>
    %20 = vector.multi_reduction <add>, %19, %cst_8 [0] : vector<256x8xf32> to vector<8xf32>
    %21 = vector.shape_cast %20 : vector<8xf32> to vector<1x8xf32>
    %cst_9 = arith.constant 3.906250e-03 : f32
    %22 = vector.broadcast %cst_9 : f32 to vector<1x8xf32>
    %23 = arith.mulf %21, %22 : vector<1x8xf32>
    %c0_10 = arith.constant 0 : index
    %c0_11 = arith.constant 0 : index
    %24 = vector.load %arg4[%c0_10, %c0_11] : memref<8x128xf32, #tpu.memory_space<vmem>>, vector<8x128xf32>
    %cst_12 = arith.constant dense<0.000000e+00> : vector<1x128xf32>
    %25 = tpu.matmul %23, %24, %cst_12 {dimension_numbers = #tpu.dot_dimension_numbers<[1], [0], [0], [1], [0, 0, 1, 1], [], []>} : vector<1x8xf32>, vector<8x128xf32>, vector<1x128xf32> -> vector<1x128xf32>
    %c0_13 = arith.constant 0 : index
    %c0_14 = arith.constant 0 : index
    %26 = vector.load %arg5[%c0_13, %c0_14] : memref<1x128xf32, #tpu.memory_space<vmem>>, vector<1x128xf32>
    %27 = arith.addf %25, %26 : vector<1x128xf32>
    %c0_15 = arith.constant 0 : index
    %c0_16 = arith.constant 0 : index
    %c0_17 = arith.constant 0 : index
    %28 = vector.load %arg6[%c0_15, %c0_16, %c0_17] : memref<1x1x128xf32, #tpu.memory_space<vmem>>, vector<1x1x128xf32>
    %29 = vector.shape_cast %28 : vector<1x1x128xf32> to vector<1x128xf32>
    %30 = vector.shape_cast %27 : vector<1x128xf32> to vector<1x1x128xf32>
    tpu.vector_store %arg6[%c0_15, %c0_16, %c0_17], %30 {strides = array<i32>} : memref<1x1x128xf32, #tpu.memory_space<vmem>>, vector<1x1x128xf32>,
    return
  }
  func.func @transform_0(%arg0: i32) -> (i32, i32, i32, i32) {
    %c0_i32 = arith.constant 0 : i32
    %c0_i32_0 = arith.constant 0 : i32
    %c0_i32_1 = arith.constant 0 : i32
    %c0_i32_2 = arith.constant 0 : i32
    return %arg0, %c0_i32, %c0_i32_0, %c0_i32_1 : i32, i32, i32, i32
  }
  func.func @transform_1(%arg0: i32) -> (i32, i32) {
    %c0_i32 = arith.constant 0 : i32
    %c0_i32_0 = arith.constant 0 : i32
    %c0_i32_1 = arith.constant 0 : i32
    return %c0_i32, %c0_i32_0 : i32, i32
  }
  func.func @transform_2(%arg0: i32) -> (i32, i32) {
    %c0_i32 = arith.constant 0 : i32
    %c0_i32_0 = arith.constant 0 : i32
    %c0_i32_1 = arith.constant 0 : i32
    return %c0_i32, %c0_i32_0 : i32, i32
  }
  func.func @transform_3(%arg0: i32) -> (i32, i32) {
    %c0_i32 = arith.constant 0 : i32
    %c0_i32_0 = arith.constant 0 : i32
    %c0_i32_1 = arith.constant 0 : i32
    return %c0_i32, %c0_i32_0 : i32, i32
  }
  func.func @transform_4(%arg0: i32) -> (i32, i32) {
    %c0_i32 = arith.constant 0 : i32
    %c0_i32_0 = arith.constant 0 : i32
    %c0_i32_1 = arith.constant 0 : i32
    return %c0_i32, %c0_i32_0 : i32, i32
  }
  func.func @transform_5(%arg0: i32) -> (i32, i32, i32) {
    %c0_i32 = arith.constant 0 : i32
    %c0_i32_0 = arith.constant 0 : i32
    %c0_i32_1 = arith.constant 0 : i32
    return %arg0, %c0_i32, %c0_i32_0 : i32, i32, i32
  }
}

</mosaic_0001>

<llo_original>
// kernel: _forward_impl.1
$region0: #{_forward_impl.1}
  #allocation0 [shape = 'u32[]', space=smem, size = 0x4, offset = 0x4, fixed_abs, tag = 'smem constant byte address 0x4 - core index']
  #allocation1 [shape = 'u32[144,128]{1,0:T(1,128)}', space=vmem, size = 0x12000, scoped, tag = 'internal scratch']
  %s0 = inlined_call_operand.hbm [shape: f32[2,18,18,4], index: 0, kind: input, shape index: {}]
  %s1 = inlined_call_operand.hbm [shape: f32[36,8], index: 1, kind: input, shape index: {}]
  %s2 = inlined_call_operand.hbm [shape: f32[1,8], index: 2, kind: input, shape index: {}]
  %s3 = inlined_call_operand.hbm [shape: f32[8,128], index: 3, kind: input, shape index: {}]
  %s4 = inlined_call_operand.hbm [shape: f32[1,128], index: 4, kind: input, shape index: {}]
  %s5 = inlined_call_operand.hbm [shape: f32[2,1,128], index: 5, kind: output, shape index: {}]
  %s6 = sld [smem:[#allocation0]]
  $region73: #{_forward_impl.1} parent=0
    _
  %s8 = ssub.s32 1, %s6
  %s9 = scalar_select 0, %s8, %s6
  $region1: #{_forward_impl.1} parent=0
    #allocation2 [shape = 'u8[442368]{0}', space=vmem, size = 0x6c000, scoped, tag = 'input window, operand 0']
    #allocation3 [shape = 's32[2]{0}', space=sflag, size = 0x8, scoped, tag = 'scoped memory for _forward_impl.1']
    #allocation4 [shape = 's32[2]{0}', space=sflag, size = 0x8, scoped, tag = 'scoped memory for _forward_impl.1']
    #allocation5 [shape = 'u8[20480]{0}', space=vmem, size = 0x5000, scoped, tag = 'input window, operand 1, single buffered']
    #allocation6 [shape = 's32[1]{0}', space=sflag, size = 0x4, scoped, tag = 'scoped memory for _forward_impl.1']
    #allocation7 [shape = 'u8[512]{0}', space=vmem, size = 0x400, scoped, tag = 'input window, operand 2, single buffered']
    #allocation8 [shape = 'u8[4096]{0}', space=vmem, size = 0x1000, scoped, tag = 'input window, operand 3, single buffered']
    #allocation9 [shape = 's32[1]{0}', space=sflag, size = 0x4, scoped, tag = 'scoped memory for _forward_impl.1']
    #allocation10 [shape = 'u8[512]{0}', space=vmem, size = 0x400, scoped, tag = 'input window, operand 4, single buffered']
    #allocation11 [shape = 'u8[1024]{0}', space=vmem, size = 0x400, scoped, tag = 'output window, operand 0']
    %10 = vsyncpa [#allocation3], 0
    %s11 = scalar_lea.sflag [#allocation3], 1
    %12 = vsyncpa %s11, 0
    %13 = vsyncpa [#allocation6], 0
    %14 = vsyncpa [#allocation9], 0
    %15 = vsyncpa [#allocation4], 0
    %s16 = scalar_lea.sflag [#allocation4], 1
    %17 = vsyncpa %s16, 0
    loop: start=0, step=1, limit=4
    $region2: #{_forward_impl.1} parent=1 // loop_pre_header
      _
    $region3: #{_forward_impl.1} parent=1 // loop_header
      %s19 = sphi 0, %s23
      %p20 = scmp.ge.s32.totalorder %s19, 4
      %s29 = sphi 0, %s31
      %s32 = sphi 0, %s29
      %s33 = sphi 0, %s32
      %s49 = sphi 0, %s33
      %s53 = sphi 0, %s53
      %s55 = sphi 0, %s53
      %s56 = sphi 0, %s55
      %s70 = sphi 0, %s56
      %s74 = sphi 0, %s74
      %s76 = sphi 0, %s74
      %s77 = sphi 0, %s76
      %s91 = sphi 0, %s77
      %s95 = sphi 0, %s95
      %s97 = sphi 0, %s95
      %s98 = sphi 0, %s97
      %s112 = sphi 0, %s98
      %s116 = sphi 0, %s116
      %s118 = sphi 0, %s116
      %s119 = sphi 0, %s118
      %s133 = sphi 0, %s119
      %s139 = sphi 0, %s141
      %s142 = sphi 0, %s139
      %s143 = sphi 0, %s142
      %s159 = sphi 0, %s143
    $region4: #{_forward_impl.1} parent=1 // loop_header_branch
      %22 = sbr.rel (%p20) target = $region8
    $region5: #{_forward_impl.1} parent=1 // loop_body
      %s24 = ssub.s32 %s19, 1
      %s25 = ssub.s32 %s19, 2
      %s26 = sadd.s32 %s19, 1
      %s27 = ssub.s32 %s19, %s26
      %p28 = scmp.eq.s32.totalorder %s27, 0
      %s30 = sadd.s32 %s29, 1
      %s31 = scalar_select %p28, %s29, %s30
      %p34 = pneg %p28
      %p35 = scmp.eq.s32.totalorder %s19, 1
      %p36 = por %p34, %p35
      %p37 = scmp.ne.s32.totalorder %s29, %s32
      %p38 = scmp.eq.s32.totalorder %s19, 0
      %p39 = por %p37, %p38
      %p40 = scmp.ne.s32.totalorder %s29, %s32
      %p41 = scmp.eq.s32.totalorder %s24, 1
      %p42 = por %p40, %p41
      %p43 = scmp.ne.s32.totalorder %s32, %s33
      %p44 = scmp.eq.s32.totalorder %s24, 0
      %p45 = por %p43, %p44
      %p46 = scmp.ne.s32.totalorder %s32, %s33
      %p47 = scmp.eq.s32.totalorder %s25, 1
      %p48 = por %p46, %p47
      %p50 = scmp.ne.s32.totalorder %s33, %s49
      %p51 = scmp.eq.s32.totalorder %s25, 0
      %p52 = por %p50, %p51
      %s54 = sadd.s32 %s53, 1
      %p57 = scmp.eq.s32.totalorder %s19, 1
      %p58 = scmp.ne.s32.totalorder %s53, %s55
      %p59 = scmp.eq.s32.totalorder %s19, 0
      %p60 = por %p58, %p59
      %p61 = scmp.ne.s32.totalorder %s53, %s55
      %p62 = scmp.eq.s32.totalorder %s24, 1
      %p63 = por %p61, %p62
      %p64 = scmp.ne.s32.totalorder %s55, %s56
      %p65 = scmp.eq.s32.totalorder %s24, 0
      %p66 = por %p64, %p65
      %p67 = scmp.ne.s32.totalorder %s55, %s56
      %p68 = scmp.eq.s32.totalorder %s25, 1
      %p69 = por %p67, %p68
      %p71 = scmp.ne.s32.totalorder %s56, %s70
      %p72 = scmp.eq.s32.totalorder %s25, 0
      %p73 = por %p71, %p72
      %s75 = sadd.s32 %s74, 1
      %p78 = scmp.eq.s32.totalorder %s19, 1
      %p79 = scmp.ne.s32.totalorder %s74, %s76
      %p80 = scmp.eq.s32.totalorder %s19, 0
      %p81 = por %p79, %p80
      %p82 = scmp.ne.s32.totalorder %s74, %s76
      %p83 = scmp.eq.s32.totalorder %s24, 1
      %p84 = por %p82, %p83
      %p85 = scmp.ne.s32.totalorder %s76, %s77
      %p86 = scmp.eq.s32.totalorder %s24, 0
      %p87 = por %p85, %p86
      %p88 = scmp.ne.s32.totalorder %s76, %s77
      %p89 = scmp.eq.s32.totalorder %s25, 1
      %p90 = por %p88, %p89
      %p92 = scmp.ne.s32.totalorder %s77, %s91
      %p93 = scmp.eq.s32.totalorder %s25, 0
      %p94 = por %p92, %p93
      %s96 = sadd.s32 %s95, 1
      %p99 = scmp.eq.s32.totalorder %s19, 1
      %p100 = scmp.ne.s32.totalorder %s95, %s97
      %p101 = scmp.eq.s32.totalorder %s19, 0
      %p102 = por %p100, %p101
      %p103 = scmp.ne.s32.totalorder %s95, %s97
      %p104 = scmp.eq.s32.totalorder %s24, 1
      %p105 = por %p103, %p104
      %p106 = scmp.ne.s32.totalorder %s97, %s98
      %p107 = scmp.eq.s32.totalorder %s24, 0
      %p108 = por %p106, %p107
      %p109 = scmp.ne.s32.totalorder %s97, %s98
      %p110 = scmp.eq.s32.totalorder %s25, 1
      %p111 = por %p109, %p110
      %p113 = scmp.ne.s32.totalorder %s98, %s112
      %p114 = scmp.eq.s32.totalorder %s25, 0
      %p115 = por %p113, %p114
      %s117 = sadd.s32 %s116, 1
      %p120 = scmp.eq.s32.totalorder %s19, 1
      %p121 = scmp.ne.s32.totalorder %s116, %s118
      %p122 = scmp.eq.s32.totalorder %s19, 0
      %p123 = por %p121, %p122
      %p124 = scmp.ne.s32.totalorder %s116, %s118
      %p125 = scmp.eq.s32.totalorder %s24, 1
      %p126 = por %p124, %p125
      %p127 = scmp.ne.s32.totalorder %s118, %s119
      %p128 = scmp.eq.s32.totalorder %s24, 0
      %p129 = por %p127, %p128
      %p130 = scmp.ne.s32.totalorder %s118, %s119
      %p131 = scmp.eq.s32.totalorder %s25, 1
      %p132 = por %p130, %p131
      %p134 = scmp.ne.s32.totalorder %s119, %s133
      %p135 = scmp.eq.s32.totalorder %s25, 0
      %p136 = por %p134, %p135
      %s137 = ssub.s32 %s19, %s26
      %p138 = scmp.eq.s32.totalorder %s137, 0
      %s140 = sadd.s32 %s139, 1
      %s141 = scalar_select %p138, %s139, %s140
      %p144 = pneg %p138
      %p145 = scmp.eq.s32.totalorder %s19, 1
      %p146 = por %p144, %p145
      %p147 = scmp.ne.s32.totalorder %s139, %s142
      %p148 = scmp.eq.s32.totalorder %s19, 0
      %p149 = por %p147, %p148
      %p150 = scmp.ne.s32.totalorder %s139, %s142
      %p151 = scmp.eq.s32.totalorder %s24, 1
      %p152 = por %p150, %p151
      %p153 = scmp.ne.s32.totalorder %s142, %s143
      %p154 = scmp.eq.s32.totalorder %s24, 0
      %p155 = por %p153, %p154
      %p156 = scmp.ne.s32.totalorder %s142, %s143
      %p157 = scmp.eq.s32.totalorder %s25, 1
      %p158 = por %p156, %p157
      %p160 = scmp.ne.s32.totalorder %s143, %s159
      %p161 = scmp.eq.s32.totalorder %s25, 0
      %p162 = por %p160, %p161
      %p163 = scmp.le.s32.totalorder 1, %s19
      %p164 = scmp.lt.s32.totalorder %s19, 3
      %p165 = pnand %p163, %p164
      %p166 = pneg %p165
      // Predicated region
      $region9: #{_forward_impl.1} parent=5 // pred_check
        _
      $region10: #{_forward_impl.1} parent=5 // pred_check_branch
        %168 = sbr.rel (%p165) target = $region12
      $region11: #{_forward_impl.1} parent=5 // pred_region
        %s169 = ssub.s32 %s19, 1
        // Predicated region
        $region13: #{_forward_impl.1} parent=11 // pred_check
          %p170 = pneg %p66
        $region14: #{_forward_impl.1} parent=11 // pred_check_branch
          %172 = sbr.rel (%p170) target = $region16
        $region15: #{_forward_impl.1} parent=11 // pred_region
          %s174 = ssub.s32 640, 640
          %175 = vsyncadd [#allocation6], %s174
          %s176 = sshll.u32 [#allocation5], 4
          %s177 = int_to_ptr.vmem [resolvable:$true] %s176
          %182 = dma.hbm_to_vmem [thread:$0]  %s1, 640, %s177, [#allocation6], 128, 128, 8
        $region16: #{_forward_impl.1} parent=11 // pred_fallthru
          _
        // Predicated region
        $region17: #{_forward_impl.1} parent=11 // pred_check
          %p183 = pneg %p87
        $region18: #{_forward_impl.1} parent=11 // pred_check_branch
          %185 = sbr.rel (%p183) target = $region20
        $region19: #{_forward_impl.1} parent=11 // pred_region
          %s187 = ssub.s32 16, 16
          %188 = vsyncadd [#allocation6], %s187
          %s190 = sshll.u32 [#allocation7], 4
          %s191 = int_to_ptr.vmem [resolvable:$true] %s190
          %193 = dma.hbm_to_vmem [thread:$0]  %s2, 16, %s191, [#allocation6]
        $region20: #{_forward_impl.1} parent=11 // pred_fallthru
          _
        // Predicated region
        $region21: #{_forward_impl.1} parent=11 // pred_check
          %p194 = pneg %p108
        $region22: #{_forward_impl.1} parent=11 // pred_check_branch
          %196 = sbr.rel (%p194) target = $region24
        $region23: #{_forward_impl.1} parent=11 // pred_region
          %s198 = ssub.s32 128, 128
          %199 = vsyncadd [#allocation9], %s198
          %s201 = sshll.u32 [#allocation8], 4
          %s202 = int_to_ptr.vmem [resolvable:$true] %s201
          %204 = dma.hbm_to_vmem [thread:$0]  %s3, 128, %s202, [#allocation9]
        $region24: #{_forward_impl.1} parent=11 // pred_fallthru
          _
        // Predicated region
        $region25: #{_forward_impl.1} parent=11 // pred_check
          %p205 = pneg %p129
        $region26: #{_forward_impl.1} parent=11 // pred_check_branch
          %207 = sbr.rel (%p205) target = $region28
        $region27: #{_forward_impl.1} parent=11 // pred_region
          %s209 = ssub.s32 16, 16
          %210 = vsyncadd [#allocation9], %s209
          %s212 = sshll.u32 [#allocation10], 4
          %s213 = int_to_ptr.vmem [resolvable:$true] %s212
          %215 = dma.hbm_to_vmem [thread:$0]  %s4, 16, %s213, [#allocation9]
        $region28: #{_forward_impl.1} parent=11 // pred_fallthru
          _
      $region12: #{_forward_impl.1} parent=5 // pred_fallthru
        _
      %p216 = scmp.lt.s32.totalorder %s19, 2
      // Predicated region
      $region29: #{_forward_impl.1} parent=5 // pred_check
        %p217 = pneg %p216
      $region30: #{_forward_impl.1} parent=5 // pred_check_branch
        %219 = sbr.rel (%p217) target = $region32
      $region31: #{_forward_impl.1} parent=5 // pred_region
        // Predicated region
        $region33: #{_forward_impl.1} parent=31 // pred_check
          %p220 = pneg %p39
        $region34: #{_forward_impl.1} parent=31 // pred_check_branch
          %222 = sbr.rel (%p220) target = $region36
        $region35: #{_forward_impl.1} parent=31 // pred_region
          %s223 = sand.u32 %s29, 1
          %s224 = scalar_lea.sflag [#allocation3], %s223
          %s225 = sand.u32 %s29, 1
          %s226 = smul.addr %s225, 432
          %s227 = scalar_lea.vmem [#allocation2], %s226
          %s229 = ssub.s32 6912, 6912
          %230 = vsyncadd %s224, %s229
          %s231 = smul.addr %s19, 54
          %s232 = smul.addr %s231, 128
          %s233 = scalar_lea.hbm %s0, %s232
          %s234 = sshll.u32 %s227, 4
          %s235 = int_to_ptr.vmem [resolvable:$true] %s234
          %240 = dma.hbm_to_vmem [thread:$0]  %s233, 6912, %s235, %s224, 128, 128, 8
        $region36: #{_forward_impl.1} parent=31 // pred_fallthru
          _
      $region32: #{_forward_impl.1} parent=5 // pred_fallthru
        _
      %p241 = scmp.le.s32.totalorder 1, %s19
      %p242 = scmp.lt.s32.totalorder %s19, 3
      %p243 = pnand %p241, %p242
      %p244 = pneg %p243
      // Predicated region
      $region37: #{_forward_impl.1} parent=5 // pred_check
        _
      $region38: #{_forward_impl.1} parent=5 // pred_check_branch
        %246 = sbr.rel (%p243) target = $region40
      $region39: #{_forward_impl.1} parent=5 // pred_region
        %s247 = ssub.s32 %s19, 1
        %s248 = sand.u32 %s32, 1
        %s249 = scalar_lea.sflag [#allocation3], %s248
        %s250 = sand.u32 %s32, 1
        %s251 = smul.addr %s250, 432
        %s252 = scalar_lea.vmem [#allocation2], %s251
        // Predicated region
        $region41: #{_forward_impl.1} parent=39 // pred_check
          %p253 = pneg %p45
        $region42: #{_forward_impl.1} parent=39 // pred_check_branch
          %255 = sbr.rel (%p253) target = $region44
        $region43: #{_forward_impl.1} parent=39 // pred_region
          %256 = dma.done %s249, 6912
        $region44: #{_forward_impl.1} parent=39 // pred_fallthru
          _
        // Predicated region
        $region45: #{_forward_impl.1} parent=39 // pred_check
          %p257 = pneg %p66
        $region46: #{_forward_impl.1} parent=39 // pred_check_branch
          %259 = sbr.rel (%p257) target = $region48
        $region47: #{_forward_impl.1} parent=39 // pred_region
          %260 = dma.done [#allocation6], 640
        $region48: #{_forward_impl.1} parent=39 // pred_fallthru
          _
        // Predicated region
        $region49: #{_forward_impl.1} parent=39 // pred_check
          %p261 = pneg %p87
        $region50: #{_forward_impl.1} parent=39 // pred_check_branch
          %263 = sbr.rel (%p261) target = $region52
        $region51: #{_forward_impl.1} parent=39 // pred_region
          %264 = dma.done [#allocation6], 16
        $region52: #{_forward_impl.1} parent=39 // pred_fallthru
          _
        // Predicated region
        $region53: #{_forward_impl.1} parent=39 // pred_check
          %p265 = pneg %p108
        $region54: #{_forward_impl.1} parent=39 // pred_check_branch
          %267 = sbr.rel (%p265) target = $region56
        $region55: #{_forward_impl.1} parent=39 // pred_region
          %268 = dma.done [#allocation9], 128
        $region56: #{_forward_impl.1} parent=39 // pred_fallthru
          _
        // Predicated region
        $region57: #{_forward_impl.1} parent=39 // pred_check
          %p269 = pneg %p129
        $region58: #{_forward_impl.1} parent=39 // pred_check_branch
          %271 = sbr.rel (%p269) target = $region60
        $region59: #{_forward_impl.1} parent=39 // pred_region
          %272 = dma.done [#allocation9], 16
        $region60: #{_forward_impl.1} parent=39 // pred_fallthru
          _
        %s273 = sand.u32 %s32, 1
        %s274 = scalar_lea.sflag [#allocation3], %s273
        %s275 = sand.u32 %s32, 1
        %s276 = smul.addr %s275, 432
        %s277 = scalar_lea.vmem [#allocation2], %s276
        %p278 = pneg %p45
        %p279 = pneg %p42
        %p280 = pneg %p66
        %p281 = pneg %p63
        %p282 = pneg %p87
        %p283 = pneg %p84
        %p284 = pneg %p108
        %p285 = pneg %p105
        %p286 = pneg %p129
        %p287 = pneg %p126
        %p288 = pneg %p155
        %p289 = pneg %p152
        %s290 = sand.u32 %s142, 1
        %s291 = scalar_lea.sflag [#allocation4], %s290
        %s292 = sand.u32 %s142, 1
        %s293 = scalar_lea.vmem [#allocation11], %s292
        %v294 = vld [vmem:[%s252] sm:$0xff]
        %v295 = vld [vmem:[%s252 + $0x8] sm:$0xff]
        %v296 = vld [vmem:[%s252 + $0x10] sm:$0x3]
        %v297 = vld [vmem:[%s252 + $0x18] sm:$0xff]
        %v298 = vld [vmem:[%s252 + $0x20] sm:$0xff]
        %v299 = vld [vmem:[%s252 + $0x28] sm:$0x3]
        %v300 = vld [vmem:[%s252 + $0x30] sm:$0xff]
        %v301 = vld [vmem:[%s252 + $0x38] sm:$0xff]
        %v302 = vld [vmem:[%s252 + $0x40] sm:$0x3]
        %v303 = vld [vmem:[%s252 + $0x48] sm:$0xff]
        %v304 = vld [vmem:[%s252 + $0x50] sm:$0xff]
        %v305 = vld [vmem:[%s252 + $0x58] sm:$0x3]
        %v306 = vld [vmem:[%s252 + $0x60] sm:$0xff]
        %v307 = vld [vmem:[%s252 + $0x68] sm:$0xff]
        %v308 = vld [vmem:[%s252 + $0x70] sm:$0x3]
        %v309 = vld [vmem:[%s252 + $0x78] sm:$0xff]
        %v310 = vld [vmem:[%s252 + $0x80] sm:$0xff]
        %v311 = vld [vmem:[%s252 + $0x88] sm:$0x3]
        %v312 = vld [vmem:[%s252 + $0x90] sm:$0xff]
        %v313 = vld [vmem:[%s252 + $0x98] sm:$0xff]
        %v314 = vld [vmem:[%s252 + $0xa0] sm:$0x3]
        %v315 = vld [vmem:[%s252 + $0xa8] sm:$0xff]
        %v316 = vld [vmem:[%s252 + $0xb0] sm:$0xff]
        %v317 = vld [vmem:[%s252 + $0xb8] sm:$0x3]
        %v318 = vld [vmem:[%s252 + $0xc0] sm:$0xff]
        %v319 = vld [vmem:[%s252 + $0xc8] sm:$0xff]
        %v320 = vld [vmem:[%s252 + $0xd0] sm:$0x3]
        %v321 = vld [vmem:[%s252 + $0xd8] sm:$0xff]
        %v322 = vld [vmem:[%s252 + $0xe0] sm:$0xff]
        %v323 = vld [vmem:[%s252 + $0xe8] sm:$0x3]
        %v324 = vld [vmem:[%s252 + $0xf0] sm:$0xff]
        %v325 = vld [vmem:[%s252 + $0xf8] sm:$0xff]
        %v326 = vld [vmem:[%s252 + $0x100] sm:$0x3]
        %v327 = vld [vmem:[%s252 + $0x108] sm:$0xff]
        %v328 = vld [vmem:[%s252 + $0x110] sm:$0xff]
        %v329 = vld [vmem:[%s252 + $0x118] sm:$0x3]
        %v330 = vld [vmem:[%s252 + $0x120] sm:$0xff]
        %v331 = vld [vmem:[%s252 + $0x128] sm:$0xff]
        %v332 = vld [vmem:[%s252 + $0x130] sm:$0x3]
        %v333 = vld [vmem:[%s252 + $0x138] sm:$0xff]
        %v334 = vld [vmem:[%s252 + $0x140] sm:$0xff]
        %v335 = vld [vmem:[%s252 + $0x148] sm:$0x3]
        %v336 = vld [vmem:[%s252 + $0x150] sm:$0xff]
        %v337 = vld [vmem:[%s252 + $0x158] sm:$0xff]
        %v338 = vld [vmem:[%s252 + $0x160] sm:$0x3]
        %v339 = vld [vmem:[%s252 + $0x168] sm:$0xff]
        %v340 = vld [vmem:[%s252 + $0x170] sm:$0xff]
        %v341 = vld [vmem:[%s252 + $0x178] sm:$0x3]
        %v342 = vld [vmem:[%s252 + $0x180] sm:$0xff]
        %v343 = vld [vmem:[%s252 + $0x188] sm:$0xff]
        %v344 = vld [vmem:[%s252 + $0x190] sm:$0x3]
        %v345 = vld [vmem:[%s252 + $0x198] sm:$0xff]
        %v346 = vld [vmem:[%s252 + $0x1a0] sm:$0xff]
        %v347 = vld [vmem:[%s252 + $0x1a8] sm:$0x3]
        %vm396 = vcmask 1046528
        %v397 = vrot.slane %v294, 1
        %v398 = vrot.slane %v295, 1
        %v399 = vsel %vm396, %v397, %v398
        %v400 = vrot.slane %v296, 1
        %v401 = vsel %vm396, %v398, %v400
        %v402 = vrot.slane %v297, 1
        %v403 = vrot.slane %v298, 1
        %v404 = vsel %vm396, %v402, %v403
        %v405 = vrot.slane %v299, 1
        %v406 = vsel %vm396, %v403, %v405
        %v407 = vrot.slane %v300, 1
        %v408 = vrot.slane %v301, 1
        %v409 = vsel %vm396, %v407, %v408
        %v410 = vrot.slane %v302, 1
        %v411 = vsel %vm396, %v408, %v410
        %v412 = vrot.slane %v303, 1
        %v413 = vrot.slane %v304, 1
        %v414 = vsel %vm396, %v412, %v413
        %v415 = vrot.slane %v305, 1
        %v416 = vsel %vm396, %v413, %v415
        %v417 = vrot.slane %v306, 1
        %v418 = vrot.slane %v307, 1
        %v419 = vsel %vm396, %v417, %v418
        %v420 = vrot.slane %v308, 1
        %v421 = vsel %vm396, %v418, %v420
        %v422 = vrot.slane %v309, 1
        %v423 = vrot.slane %v310, 1
        %v424 = vsel %vm396, %v422, %v423
        %v425 = vrot.slane %v311, 1
        %v426 = vsel %vm396, %v423, %v425
        %v427 = vrot.slane %v312, 1
        %v428 = vrot.slane %v313, 1
        %v429 = vsel %vm396, %v427, %v428
        %v430 = vrot.slane %v314, 1
        %v431 = vsel %vm396, %v428, %v430
        %v432 = vrot.slane %v315, 1
        %v433 = vrot.slane %v316, 1
        %v434 = vsel %vm396, %v432, %v433
        %v435 = vrot.slane %v317, 1
        %v436 = vsel %vm396, %v433, %v435
        %v437 = vrot.slane %v318, 1
        %v438 = vrot.slane %v319, 1
        %v439 = vsel %vm396, %v437, %v438
        %v440 = vrot.slane %v320, 1
        %v441 = vsel %vm396, %v438, %v440
        %v442 = vrot.slane %v321, 1
        %v443 = vrot.slane %v322, 1
        %v444 = vsel %vm396, %v442, %v443
        %v445 = vrot.slane %v323, 1
        %v446 = vsel %vm396, %v443, %v445
        %v447 = vrot.slane %v324, 1
        %v448 = vrot.slane %v325, 1
        %v449 = vsel %vm396, %v447, %v448
        %v450 = vrot.slane %v326, 1
        %v451 = vsel %vm396, %v448, %v450
        %v452 = vrot.slane %v327, 1
        %v453 = vrot.slane %v328, 1
        %v454 = vsel %vm396, %v452, %v453
        %v455 = vrot.slane %v329, 1
        %v456 = vsel %vm396, %v453, %v455
        %v457 = vrot.slane %v330, 1
        %v458 = vrot.slane %v331, 1
        %v459 = vsel %vm396, %v457, %v458
        %v460 = vrot.slane %v332, 1
        %v461 = vsel %vm396, %v458, %v460
        %v462 = vrot.slane %v333, 1
        %v463 = vrot.slane %v334, 1
        %v464 = vsel %vm396, %v462, %v463
        %v465 = vrot.slane %v335, 1
        %v466 = vsel %vm396, %v463, %v465
        %v467 = vrot.slane %v336, 1
        %v468 = vrot.slane %v337, 1
        %v469 = vsel %vm396, %v467, %v468
        %v470 = vrot.slane %v338, 1
        %v471 = vsel %vm396, %v468, %v470
        %v472 = vrot.slane %v339, 1
        %v473 = vrot.slane %v340, 1
        %v474 = vsel %vm396, %v472, %v473
        %v475 = vrot.slane %v341, 1
        %v476 = vsel %vm396, %v473, %v475
        %477 = vrot.lane.b32.xlu0 %v399, 4
        %v478 = vpop.permute.xlu0 %477
        %479 = vrot.lane.b32.xlu0 %v401, 4
        %v480 = vpop.permute.xlu0 %479
        %481 = vrot.lane.b32.xlu0 %v404, 4
        %v482 = vpop.permute.xlu0 %481
        %483 = vrot.lane.b32.xlu0 %v406, 4
        %v484 = vpop.permute.xlu0 %483
        %485 = vrot.lane.b32.xlu0 %v409, 4
        %v486 = vpop.permute.xlu0 %485
        %487 = vrot.lane.b32.xlu0 %v411, 4
        %v488 = vpop.permute.xlu0 %487
        %489 = vrot.lane.b32.xlu0 %v414, 4
        %v490 = vpop.permute.xlu0 %489
        %491 = vrot.lane.b32.xlu0 %v416, 4
        %v492 = vpop.permute.xlu0 %491
        %493 = vrot.lane.b32.xlu0 %v419, 4
        %v494 = vpop.permute.xlu0 %493
        %495 = vrot.lane.b32.xlu0 %v421, 4
        %v496 = vpop.permute.xlu0 %495
        %497 = vrot.lane.b32.xlu0 %v424, 4
        %v498 = vpop.permute.xlu0 %497
        %499 = vrot.lane.b32.xlu0 %v426, 4
        %v500 = vpop.permute.xlu0 %499
        %501 = vrot.lane.b32.xlu0 %v429, 4
        %v502 = vpop.permute.xlu0 %501
        %503 = vrot.lane.b32.xlu0 %v431, 4
        %v504 = vpop.permute.xlu0 %503
        %505 = vrot.lane.b32.xlu0 %v434, 4
        %v506 = vpop.permute.xlu0 %505
        %507 = vrot.lane.b32.xlu0 %v436, 4
        %v508 = vpop.permute.xlu0 %507
        %509 = vrot.lane.b32.xlu0 %v439, 4
        %v510 = vpop.permute.xlu0 %509
        %511 = vrot.lane.b32.xlu0 %v441, 4
        %v512 = vpop.permute.xlu0 %511
        %513 = vrot.lane.b32.xlu0 %v444, 4
        %v514 = vpop.permute.xlu0 %513
        %515 = vrot.lane.b32.xlu0 %v446, 4
        %v516 = vpop.permute.xlu0 %515
        %517 = vrot.lane.b32.xlu0 %v449, 4
        %v518 = vpop.permute.xlu0 %517
        %519 = vrot.lane.b32.xlu0 %v451, 4
        %v520 = vpop.permute.xlu0 %519
        %521 = vrot.lane.b32.xlu0 %v454, 4
        %v522 = vpop.permute.xlu0 %521
        %523 = vrot.lane.b32.xlu0 %v456, 4
        %v524 = vpop.permute.xlu0 %523
        %525 = vrot.lane.b32.xlu0 %v459, 4
        %v526 = vpop.permute.xlu0 %525
        %527 = vrot.lane.b32.xlu0 %v461, 4
        %v528 = vpop.permute.xlu0 %527
        %529 = vrot.lane.b32.xlu0 %v464, 4
        %v530 = vpop.permute.xlu0 %529
        %531 = vrot.lane.b32.xlu0 %v466, 4
        %v532 = vpop.permute.xlu0 %531
        %533 = vrot.lane.b32.xlu0 %v469, 4
        %v534 = vpop.permute.xlu0 %533
        %535 = vrot.lane.b32.xlu0 %v471, 4
        %v536 = vpop.permute.xlu0 %535
        %537 = vrot.lane.b32.xlu0 %v474, 4
        %v538 = vpop.permute.xlu0 %537
        %539 = vrot.lane.b32.xlu0 %v476, 4
        %v540 = vpop.permute.xlu0 %539
        %vm573 = vcmask 1045504
        %v574 = vrot.slane %v294, 2
        %v575 = vrot.slane %v295, 2
        %v576 = vsel %vm573, %v574, %v575
        %v577 = vrot.slane %v296, 2
        %v578 = vsel %vm573, %v575, %v577
        %v579 = vrot.slane %v297, 2
        %v580 = vrot.slane %v298, 2
        %v581 = vsel %vm573, %v579, %v580
        %v582 = vrot.slane %v299, 2
        %v583 = vsel %vm573, %v580, %v582
        %v584 = vrot.slane %v300, 2
        %v585 = vrot.slane %v301, 2
        %v586 = vsel %vm573, %v584, %v585
        %v587 = vrot.slane %v302, 2
        %v588 = vsel %vm573, %v585, %v587
        %v589 = vrot.slane %v303, 2
        %v590 = vrot.slane %v304, 2
        %v591 = vsel %vm573, %v589, %v590
        %v592 = vrot.slane %v305, 2
        %v593 = vsel %vm573, %v590, %v592
        %v594 = vrot.slane %v306, 2
        %v595 = vrot.slane %v307, 2
        %v596 = vsel %vm573, %v594, %v595
        %v597 = vrot.slane %v308, 2
        %v598 = vsel %vm573, %v595, %v597
        %v599 = vrot.slane %v309, 2
        %v600 = vrot.slane %v310, 2
        %v601 = vsel %vm573, %v599, %v600
        %v602 = vrot.slane %v311, 2
        %v603 = vsel %vm573, %v600, %v602
        %v604 = vrot.slane %v312, 2
        %v605 = vrot.slane %v313, 2
        %v606 = vsel %vm573, %v604, %v605
        %v607 = vrot.slane %v314, 2
        %v608 = vsel %vm573, %v605, %v607
        %v609 = vrot.slane %v315, 2
        %v610 = vrot.slane %v316, 2
        %v611 = vsel %vm573, %v609, %v610
        %v612 = vrot.slane %v317, 2
        %v613 = vsel %vm573, %v610, %v612
        %v614 = vrot.slane %v318, 2
        %v615 = vrot.slane %v319, 2
        %v616 = vsel %vm573, %v614, %v615
        %v617 = vrot.slane %v320, 2
        %v618 = vsel %vm573, %v615, %v617
        %v619 = vrot.slane %v321, 2
        %v620 = vrot.slane %v322, 2
        %v621 = vsel %vm573, %v619, %v620
        %v622 = vrot.slane %v323, 2
        %v623 = vsel %vm573, %v620, %v622
        %v624 = vrot.slane %v324, 2
        %v625 = vrot.slane %v325, 2
        %v626 = vsel %vm573, %v624, %v625
        %v627 = vrot.slane %v326, 2
        %v628 = vsel %vm573, %v625, %v627
        %v629 = vrot.slane %v327, 2
        %v630 = vrot.slane %v328, 2
        %v631 = vsel %vm573, %v629, %v630
        %v632 = vrot.slane %v329, 2
        %v633 = vsel %vm573, %v630, %v632
        %v634 = vrot.slane %v330, 2
        %v635 = vrot.slane %v331, 2
        %v636 = vsel %vm573, %v634, %v635
        %v637 = vrot.slane %v332, 2
        %v638 = vsel %vm573, %v635, %v637
        %v639 = vrot.slane %v333, 2
        %v640 = vrot.slane %v334, 2
        %v641 = vsel %vm573, %v639, %v640
        %v642 = vrot.slane %v335, 2
        %v643 = vsel %vm573, %v640, %v642
        %v644 = vrot.slane %v336, 2
        %v645 = vrot.slane %v337, 2
        %v646 = vsel %vm573, %v644, %v645
        %v647 = vrot.slane %v338, 2
        %v648 = vsel %vm573, %v645, %v647
        %v649 = vrot.slane %v339, 2
        %v650 = vrot.slane %v340, 2
        %v651 = vsel %vm573, %v649, %v650
        %v652 = vrot.slane %v341, 2
        %v653 = vsel %vm573, %v650, %v652
        %654 = vrot.lane.b32.xlu0 %v576, 8
        %v655 = vpop.permute.xlu0 %654
        %656 = vrot.lane.b32.xlu0 %v578, 8
        %v657 = vpop.permute.xlu0 %656
        %658 = vrot.lane.b32.xlu0 %v581, 8
        %v659 = vpop.permute.xlu0 %658
        %660 = vrot.lane.b32.xlu0 %v583, 8
        %v661 = vpop.permute.xlu0 %660
        %662 = vrot.lane.b32.xlu0 %v586, 8
        %v663 = vpop.permute.xlu0 %662
        %664 = vrot.lane.b32.xlu0 %v588, 8
        %v665 = vpop.permute.xlu0 %664
        %666 = vrot.lane.b32.xlu0 %v591, 8
        %v667 = vpop.permute.xlu0 %666
        %668 = vrot.lane.b32.xlu0 %v593, 8
        %v669 = vpop.permute.xlu0 %668
        %670 = vrot.lane.b32.xlu0 %v596, 8
        %v671 = vpop.permute.xlu0 %670
        %672 = vrot.lane.b32.xlu0 %v598, 8
        %v673 = vpop.permute.xlu0 %672
        %674 = vrot.lane.b32.xlu0 %v601, 8
        %v675 = vpop.permute.xlu0 %674
        %676 = vrot.lane.b32.xlu0 %v603, 8
        %v677 = vpop.permute.xlu0 %676
        %678 = vrot.lane.b32.xlu0 %v606, 8
        %v679 = vpop.permute.xlu0 %678
        %680 = vrot.lane.b32.xlu0 %v608, 8
        %v681 = vpop.permute.xlu0 %680
        %682 = vrot.lane.b32.xlu0 %v611, 8
        %v683 = vpop.permute.xlu0 %682
        %684 = vrot.lane.b32.xlu0 %v613, 8
        %v685 = vpop.permute.xlu0 %684
        %686 = vrot.lane.b32.xlu0 %v616, 8
        %v687 = vpop.permute.xlu0 %686
        %688 = vrot.lane.b32.xlu0 %v618, 8
        %v689 = vpop.permute.xlu0 %688
        %690 = vrot.lane.b32.xlu0 %v621, 8
        %v691 = vpop.permute.xlu0 %690
        %692 = vrot.lane.b32.xlu0 %v623, 8
        %v693 = vpop.permute.xlu0 %692
        %694 = vrot.lane.b32.xlu0 %v626, 8
        %v695 = vpop.permute.xlu0 %694
        %696 = vrot.lane.b32.xlu0 %v628, 8
        %v697 = vpop.permute.xlu0 %696
        %698 = vrot.lane.b32.xlu0 %v631, 8
        %v699 = vpop.permute.xlu0 %698
        %700 = vrot.lane.b32.xlu0 %v633, 8
        %v701 = vpop.permute.xlu0 %700
        %702 = vrot.lane.b32.xlu0 %v636, 8
        %v703 = vpop.permute.xlu0 %702
        %704 = vrot.lane.b32.xlu0 %v638, 8
        %v705 = vpop.permute.xlu0 %704
        %706 = vrot.lane.b32.xlu0 %v641, 8
        %v707 = vpop.permute.xlu0 %706
        %708 = vrot.lane.b32.xlu0 %v643, 8
        %v709 = vpop.permute.xlu0 %708
        %710 = vrot.lane.b32.xlu0 %v646, 8
        %v711 = vpop.permute.xlu0 %710
        %712 = vrot.lane.b32.xlu0 %v648, 8
        %v713 = vpop.permute.xlu0 %712
        %714 = vrot.lane.b32.xlu0 %v651, 8
        %v715 = vpop.permute.xlu0 %714
        %716 = vrot.lane.b32.xlu0 %v653, 8
        %v717 = vpop.permute.xlu0 %716
        %752 = vrot.lane.b32.xlu0 %v297, 12
        %v753 = vpop.permute.xlu0 %752
        %754 = vrot.lane.b32.xlu0 %v298, 12
        %v755 = vpop.permute.xlu0 %754
        %756 = vrot.lane.b32.xlu0 %v300, 12
        %v757 = vpop.permute.xlu0 %756
        %758 = vrot.lane.b32.xlu0 %v301, 12
        %v759 = vpop.permute.xlu0 %758
        %760 = vrot.lane.b32.xlu0 %v303, 12
        %v761 = vpop.permute.xlu0 %760
        %762 = vrot.lane.b32.xlu0 %v304, 12
        %v763 = vpop.permute.xlu0 %762
        %764 = vrot.lane.b32.xlu0 %v306, 12
        %v765 = vpop.permute.xlu0 %764
        %766 = vrot.lane.b32.xlu0 %v307, 12
        %v767 = vpop.permute.xlu0 %766
        %768 = vrot.lane.b32.xlu0 %v309, 12
        %v769 = vpop.permute.xlu0 %768
        %770 = vrot.lane.b32.xlu0 %v310, 12
        %v771 = vpop.permute.xlu0 %770
        %772 = vrot.lane.b32.xlu0 %v312, 12
        %v773 = vpop.permute.xlu0 %772
        %774 = vrot.lane.b32.xlu0 %v313, 12
        %v775 = vpop.permute.xlu0 %774
        %776 = vrot.lane.b32.xlu0 %v315, 12
        %v777 = vpop.permute.xlu0 %776
        %778 = vrot.lane.b32.xlu0 %v316, 12
        %v779 = vpop.permute.xlu0 %778
        %780 = vrot.lane.b32.xlu0 %v318, 12
        %v781 = vpop.permute.xlu0 %780
        %782 = vrot.lane.b32.xlu0 %v319, 12
        %v783 = vpop.permute.xlu0 %782
        %784 = vrot.lane.b32.xlu0 %v321, 12
        %v785 = vpop.permute.xlu0 %784
        %786 = vrot.lane.b32.xlu0 %v322, 12
        %v787 = vpop.permute.xlu0 %786
        %788 = vrot.lane.b32.xlu0 %v324, 12
        %v789 = vpop.permute.xlu0 %788
        %790 = vrot.lane.b32.xlu0 %v325, 12
        %v791 = vpop.permute.xlu0 %790
        %792 = vrot.lane.b32.xlu0 %v327, 12
        %v793 = vpop.permute.xlu0 %792
        %794 = vrot.lane.b32.xlu0 %v328, 12
        %v795 = vpop.permute.xlu0 %794
        %796 = vrot.lane.b32.xlu0 %v330, 12
        %v797 = vpop.permute.xlu0 %796
        %798 = vrot.lane.b32.xlu0 %v331, 12
        %v799 = vpop.permute.xlu0 %798
        %800 = vrot.lane.b32.xlu0 %v333, 12
        %v801 = vpop.permute.xlu0 %800
        %802 = vrot.lane.b32.xlu0 %v334, 12
        %v803 = vpop.permute.xlu0 %802
        %804 = vrot.lane.b32.xlu0 %v336, 12
        %v805 = vpop.permute.xlu0 %804
        %806 = vrot.lane.b32.xlu0 %v337, 12
        %v807 = vpop.permute.xlu0 %806
        %808 = vrot.lane.b32.xlu0 %v339, 12
        %v809 = vpop.permute.xlu0 %808
        %810 = vrot.lane.b32.xlu0 %v340, 12
        %v811 = vpop.permute.xlu0 %810
        %812 = vrot.lane.b32.xlu0 %v342, 12
        %v813 = vpop.permute.xlu0 %812
        %814 = vrot.lane.b32.xlu0 %v343, 12
        %v815 = vpop.permute.xlu0 %814
        %v849 = vrot.slane %v342, 1
        %v850 = vrot.slane %v343, 1
        %v851 = vsel %vm396, %v849, %v850
        %v852 = vrot.slane %v344, 1
        %v853 = vsel %vm396, %v850, %v852
        %854 = vrot.lane.b32.xlu0 %v404, 16
        %v855 = vpop.permute.xlu0 %854
        %856 = vrot.lane.b32.xlu0 %v406, 16
        %v857 = vpop.permute.xlu0 %856
        %858 = vrot.lane.b32.xlu0 %v409, 16
        %v859 = vpop.permute.xlu0 %858
        %860 = vrot.lane.b32.xlu0 %v411, 16
        %v861 = vpop.permute.xlu0 %860
        %862 = vrot.lane.b32.xlu0 %v414, 16
        %v863 = vpop.permute.xlu0 %862
        %864 = vrot.lane.b32.xlu0 %v416, 16
        %v865 = vpop.permute.xlu0 %864
        %866 = vrot.lane.b32.xlu0 %v419, 16
        %v867 = vpop.permute.xlu0 %866
        %868 = vrot.lane.b32.xlu0 %v421, 16
        %v869 = vpop.permute.xlu0 %868
        %870 = vrot.lane.b32.xlu0 %v424, 16
        %v871 = vpop.permute.xlu0 %870
        %872 = vrot.lane.b32.xlu0 %v426, 16
        %v873 = vpop.permute.xlu0 %872
        %874 = vrot.lane.b32.xlu0 %v429, 16
        %v875 = vpop.permute.xlu0 %874
        %876 = vrot.lane.b32.xlu0 %v431, 16
        %v877 = vpop.permute.xlu0 %876
        %878 = vrot.lane.b32.xlu0 %v434, 16
        %v879 = vpop.permute.xlu0 %878
        %880 = vrot.lane.b32.xlu0 %v436, 16
        %v881 = vpop.permute.xlu0 %880
        %882 = vrot.lane.b32.xlu0 %v439, 16
        %v883 = vpop.permute.xlu0 %882
        %884 = vrot.lane.b32.xlu0 %v441, 16
        %v885 = vpop.permute.xlu0 %884
        %886 = vrot.lane.b32.xlu0 %v444, 16
        %v887 = vpop.permute.xlu0 %886
        %888 = vrot.lane.b32.xlu0 %v446, 16
        %v889 = vpop.permute.xlu0 %888
        %890 = vrot.lane.b32.xlu0 %v449, 16
        %v891 = vpop.permute.xlu0 %890
        %892 = vrot.lane.b32.xlu0 %v451, 16
        %v893 = vpop.permute.xlu0 %892
        %894 = vrot.lane.b32.xlu0 %v454, 16
        %v895 = vpop.permute.xlu0 %894
        %896 = vrot.lane.b32.xlu0 %v456, 16
        %v897 = vpop.permute.xlu0 %896
        %898 = vrot.lane.b32.xlu0 %v459, 16
        %v899 = vpop.permute.xlu0 %898
        %900 = vrot.lane.b32.xlu0 %v461, 16
        %v901 = vpop.permute.xlu0 %900
        %902 = vrot.lane.b32.xlu0 %v464, 16
        %v903 = vpop.permute.xlu0 %902
        %904 = vrot.lane.b32.xlu0 %v466, 16
        %v905 = vpop.permute.xlu0 %904
        %906 = vrot.lane.b32.xlu0 %v469, 16
        %v907 = vpop.permute.xlu0 %906
        %908 = vrot.lane.b32.xlu0 %v471, 16
        %v909 = vpop.permute.xlu0 %908
        %910 = vrot.lane.b32.xlu0 %v474, 16
        %v911 = vpop.permute.xlu0 %910
        %912 = vrot.lane.b32.xlu0 %v476, 16
        %v913 = vpop.permute.xlu0 %912
        %914 = vrot.lane.b32.xlu0 %v851, 16
        %v915 = vpop.permute.xlu0 %914
        %916 = vrot.lane.b32.xlu0 %v853, 16
        %v917 = vpop.permute.xlu0 %916
        %v950 = vrot.slane %v342, 2
        %v951 = vrot.slane %v343, 2
        %v952 = vsel %vm573, %v950, %v951
        %v953 = vrot.slane %v344, 2
        %v954 = vsel %vm573, %v951, %v953
        %955 = vrot.lane.b32.xlu0 %v581, 20
        %v956 = vpop.permute.xlu0 %955
        %957 = vrot.lane.b32.xlu0 %v583, 20
        %v958 = vpop.permute.xlu0 %957
        %959 = vrot.lane.b32.xlu0 %v586, 20
        %v960 = vpop.permute.xlu0 %959
        %961 = vrot.lane.b32.xlu0 %v588, 20
        %v962 = vpop.permute.xlu0 %961
        %963 = vrot.lane.b32.xlu0 %v591, 20
        %v964 = vpop.permute.xlu0 %963
        %965 = vrot.lane.b32.xlu0 %v593, 20
        %v966 = vpop.permute.xlu0 %965
        %967 = vrot.lane.b32.xlu0 %v596, 20
        %v968 = vpop.permute.xlu0 %967
        %969 = vrot.lane.b32.xlu0 %v598, 20
        %v970 = vpop.permute.xlu0 %969
        %971 = vrot.lane.b32.xlu0 %v601, 20
        %v972 = vpop.permute.xlu0 %971
        %973 = vrot.lane.b32.xlu0 %v603, 20
        %v974 = vpop.permute.xlu0 %973
        %975 = vrot.lane.b32.xlu0 %v606, 20
        %v976 = vpop.permute.xlu0 %975
        %977 = vrot.lane.b32.xlu0 %v608, 20
        %v978 = vpop.permute.xlu0 %977
        %979 = vrot.lane.b32.xlu0 %v611, 20
        %v980 = vpop.permute.xlu0 %979
        %981 = vrot.lane.b32.xlu0 %v613, 20
        %v982 = vpop.permute.xlu0 %981
        %983 = vrot.lane.b32.xlu0 %v616, 20
        %v984 = vpop.permute.xlu0 %983
        %985 = vrot.lane.b32.xlu0 %v618, 20
        %v986 = vpop.permute.xlu0 %985
        %987 = vrot.lane.b32.xlu0 %v621, 20
        %v988 = vpop.permute.xlu0 %987
        %989 = vrot.lane.b32.xlu0 %v623, 20
        %v990 = vpop.permute.xlu0 %989
        %991 = vrot.lane.b32.xlu0 %v626, 20
        %v992 = vpop.permute.xlu0 %991
        %993 = vrot.lane.b32.xlu0 %v628, 20
        %v994 = vpop.permute.xlu0 %993
        %995 = vrot.lane.b32.xlu0 %v631, 20
        %v996 = vpop.permute.xlu0 %995
        %997 = vrot.lane.b32.xlu0 %v633, 20
        %v998 = vpop.permute.xlu0 %997
        %999 = vrot.lane.b32.xlu0 %v636, 20
        %v1000 = vpop.permute.xlu0 %999
        %1001 = vrot.lane.b32.xlu0 %v638, 20
        %v1002 = vpop.permute.xlu0 %1001
        %1003 = vrot.lane.b32.xlu0 %v641, 20
        %v1004 = vpop.permute.xlu0 %1003
        %1005 = vrot.lane.b32.xlu0 %v643, 20
        %v1006 = vpop.permute.xlu0 %1005
        %1007 = vrot.lane.b32.xlu0 %v646, 20
        %v1008 = vpop.permute.xlu0 %1007
        %1009 = vrot.lane.b32.xlu0 %v648, 20
        %v1010 = vpop.permute.xlu0 %1009
        %1011 = vrot.lane.b32.xlu0 %v651, 20
        %v1012 = vpop.permute.xlu0 %1011
        %1013 = vrot.lane.b32.xlu0 %v653, 20
        %v1014 = vpop.permute.xlu0 %1013
        %1015 = vrot.lane.b32.xlu0 %v952, 20
        %v1016 = vpop.permute.xlu0 %1015
        %1017 = vrot.lane.b32.xlu0 %v954, 20
        %v1018 = vpop.permute.xlu0 %1017
        %1053 = vrot.lane.b32.xlu0 %v300, 24
        %v1054 = vpop.permute.xlu0 %1053
        %1055 = vrot.lane.b32.xlu0 %v301, 24
        %v1056 = vpop.permute.xlu0 %1055
        %1057 = vrot.lane.b32.xlu0 %v303, 24
        %v1058 = vpop.permute.xlu0 %1057
        %1059 = vrot.lane.b32.xlu0 %v304, 24
        %v1060 = vpop.permute.xlu0 %1059
        %1061 = vrot.lane.b32.xlu0 %v306, 24
        %v1062 = vpop.permute.xlu0 %1061
        %1063 = vrot.lane.b32.xlu0 %v307, 24
        %v1064 = vpop.permute.xlu0 %1063
        %1065 = vrot.lane.b32.xlu0 %v309, 24
        %v1066 = vpop.permute.xlu0 %1065
        %1067 = vrot.lane.b32.xlu0 %v310, 24
        %v1068 = vpop.permute.xlu0 %1067
        %1069 = vrot.lane.b32.xlu0 %v312, 24
        %v1070 = vpop.permute.xlu0 %1069
        %1071 = vrot.lane.b32.xlu0 %v313, 24
        %v1072 = vpop.permute.xlu0 %1071
        %1073 = vrot.lane.b32.xlu0 %v315, 24
        %v1074 = vpop.permute.xlu0 %1073
        %1075 = vrot.lane.b32.xlu0 %v316, 24
        %v1076 = vpop.permute.xlu0 %1075
        %1077 = vrot.lane.b32.xlu0 %v318, 24
        %v1078 = vpop.permute.xlu0 %1077
        %1079 = vrot.lane.b32.xlu0 %v319, 24
        %v1080 = vpop.permute.xlu0 %1079
        %1081 = vrot.lane.b32.xlu0 %v321, 24
        %v1082 = vpop.permute.xlu0 %1081
        %1083 = vrot.lane.b32.xlu0 %v322, 24
        %v1084 = vpop.permute.xlu0 %1083
        %1085 = vrot.lane.b32.xlu0 %v324, 24
        %v1086 = vpop.permute.xlu0 %1085
        %1087 = vrot.lane.b32.xlu0 %v325, 24
        %v1088 = vpop.permute.xlu0 %1087
        %1089 = vrot.lane.b32.xlu0 %v327, 24
        %v1090 = vpop.permute.xlu0 %1089
        %1091 = vrot.lane.b32.xlu0 %v328, 24
        %v1092 = vpop.permute.xlu0 %1091
        %1093 = vrot.lane.b32.xlu0 %v330, 24
        %v1094 = vpop.permute.xlu0 %1093
        %1095 = vrot.lane.b32.xlu0 %v331, 24
        %v1096 = vpop.permute.xlu0 %1095
        %1097 = vrot.lane.b32.xlu0 %v333, 24
        %v1098 = vpop.permute.xlu0 %1097
        %1099 = vrot.lane.b32.xlu0 %v334, 24
        %v1100 = vpop.permute.xlu0 %1099
        %1101 = vrot.lane.b32.xlu0 %v336, 24
        %v1102 = vpop.permute.xlu0 %1101
        %1103 = vrot.lane.b32.xlu0 %v337, 24
        %v1104 = vpop.permute.xlu0 %1103
        %1105 = vrot.lane.b32.xlu0 %v339, 24
        %v1106 = vpop.permute.xlu0 %1105
        %1107 = vrot.lane.b32.xlu0 %v340, 24
        %v1108 = vpop.permute.xlu0 %1107
        %1109 = vrot.lane.b32.xlu0 %v342, 24
        %v1110 = vpop.permute.xlu0 %1109
        %1111 = vrot.lane.b32.xlu0 %v343, 24
        %v1112 = vpop.permute.xlu0 %1111
        %1113 = vrot.lane.b32.xlu0 %v345, 24
        %v1114 = vpop.permute.xlu0 %1113
        %1115 = vrot.lane.b32.xlu0 %v346, 24
        %v1116 = vpop.permute.xlu0 %1115
        %v1150 = vrot.slane %v345, 1
        %v1151 = vrot.slane %v346, 1
        %v1152 = vsel %vm396, %v1150, %v1151
        %v1153 = vrot.slane %v347, 1
        %v1154 = vsel %vm396, %v1151, %v1153
        %1155 = vrot.lane.b32.xlu0 %v409, 28
        %v1156 = vpop.permute.xlu0 %1155
        %1157 = vrot.lane.b32.xlu0 %v411, 28
        %v1158 = vpop.permute.xlu0 %1157
        %1159 = vrot.lane.b32.xlu0 %v414, 28
        %v1160 = vpop.permute.xlu0 %1159
        %1161 = vrot.lane.b32.xlu0 %v416, 28
        %v1162 = vpop.permute.xlu0 %1161
        %1163 = vrot.lane.b32.xlu0 %v419, 28
        %v1164 = vpop.permute.xlu0 %1163
        %1165 = vrot.lane.b32.xlu0 %v421, 28
        %v1166 = vpop.permute.xlu0 %1165
        %1167 = vrot.lane.b32.xlu0 %v424, 28
        %v1168 = vpop.permute.xlu0 %1167
        %1169 = vrot.lane.b32.xlu0 %v426, 28
        %v1170 = vpop.permute.xlu0 %1169
        %1171 = vrot.lane.b32.xlu0 %v429, 28
        %v1172 = vpop.permute.xlu0 %1171
        %1173 = vrot.lane.b32.xlu0 %v431, 28
        %v1174 = vpop.permute.xlu0 %1173
        %1175 = vrot.lane.b32.xlu0 %v434, 28
        %v1176 = vpop.permute.xlu0 %1175
        %1177 = vrot.lane.b32.xlu0 %v436, 28
        %v1178 = vpop.permute.xlu0 %1177
        %1179 = vrot.lane.b32.xlu0 %v439, 28
        %v1180 = vpop.permute.xlu0 %1179
        %1181 = vrot.lane.b32.xlu0 %v441, 28
        %v1182 = vpop.permute.xlu0 %1181
        %1183 = vrot.lane.b32.xlu0 %v444, 28
        %v1184 = vpop.permute.xlu0 %1183
        %1185 = vrot.lane.b32.xlu0 %v446, 28
        %v1186 = vpop.permute.xlu0 %1185
        %1187 = vrot.lane.b32.xlu0 %v449, 28
        %v1188 = vpop.permute.xlu0 %1187
        %1189 = vrot.lane.b32.xlu0 %v451, 28
        %v1190 = vpop.permute.xlu0 %1189
        %1191 = vrot.lane.b32.xlu0 %v454, 28
        %v1192 = vpop.permute.xlu0 %1191
        %1193 = vrot.lane.b32.xlu0 %v456, 28
        %v1194 = vpop.permute.xlu0 %1193
        %1195 = vrot.lane.b32.xlu0 %v459, 28
        %v1196 = vpop.permute.xlu0 %1195
        %1197 = vrot.lane.b32.xlu0 %v461, 28
        %v1198 = vpop.permute.xlu0 %1197
        %1199 = vrot.lane.b32.xlu0 %v464, 28
        %v1200 = vpop.permute.xlu0 %1199
        %1201 = vrot.lane.b32.xlu0 %v466, 28
        %v1202 = vpop.permute.xlu0 %1201
        %1203 = vrot.lane.b32.xlu0 %v469, 28
        %v1204 = vpop.permute.xlu0 %1203
        %1205 = vrot.lane.b32.xlu0 %v471, 28
        %v1206 = vpop.permute.xlu0 %1205
        %1207 = vrot.lane.b32.xlu0 %v474, 28
        %v1208 = vpop.permute.xlu0 %1207
        %1209 = vrot.lane.b32.xlu0 %v476, 28
        %v1210 = vpop.permute.xlu0 %1209
        %1211 = vrot.lane.b32.xlu0 %v851, 28
        %v1212 = vpop.permute.xlu0 %1211
        %1213 = vrot.lane.b32.xlu0 %v853, 28
        %v1214 = vpop.permute.xlu0 %1213
        %1215 = vrot.lane.b32.xlu0 %v1152, 28
        %v1216 = vpop.permute.xlu0 %1215
        %1217 = vrot.lane.b32.xlu0 %v1154, 28
        %v1218 = vpop.permute.xlu0 %1217
        %v1251 = vrot.slane %v345, 2
        %v1252 = vrot.slane %v346, 2
        %v1253 = vsel %vm573, %v1251, %v1252
        %v1254 = vrot.slane %v347, 2
        %v1255 = vsel %vm573, %v1252, %v1254
        %1256 = vrot.lane.b32.xlu0 %v586, 32
        %v1257 = vpop.permute.xlu0 %1256
        %1258 = vrot.lane.b32.xlu0 %v588, 32
        %v1259 = vpop.permute.xlu0 %1258
        %1260 = vrot.lane.b32.xlu0 %v591, 32
        %v1261 = vpop.permute.xlu0 %1260
        %1262 = vrot.lane.b32.xlu0 %v593, 32
        %v1263 = vpop.permute.xlu0 %1262
        %1264 = vrot.lane.b32.xlu0 %v596, 32
        %v1265 = vpop.permute.xlu0 %1264
        %1266 = vrot.lane.b32.xlu0 %v598, 32
        %v1267 = vpop.permute.xlu0 %1266
        %1268 = vrot.lane.b32.xlu0 %v601, 32
        %v1269 = vpop.permute.xlu0 %1268
        %1270 = vrot.lane.b32.xlu0 %v603, 32
        %v1271 = vpop.permute.xlu0 %1270
        %1272 = vrot.lane.b32.xlu0 %v606, 32
        %v1273 = vpop.permute.xlu0 %1272
        %1274 = vrot.lane.b32.xlu0 %v608, 32
        %v1275 = vpop.permute.xlu0 %1274
        %1276 = vrot.lane.b32.xlu0 %v611, 32
        %v1277 = vpop.permute.xlu0 %1276
        %1278 = vrot.lane.b32.xlu0 %v613, 32
        %v1279 = vpop.permute.xlu0 %1278
        %1280 = vrot.lane.b32.xlu0 %v616, 32
        %v1281 = vpop.permute.xlu0 %1280
        %1282 = vrot.lane.b32.xlu0 %v618, 32
        %v1283 = vpop.permute.xlu0 %1282
        %1284 = vrot.lane.b32.xlu0 %v621, 32
        %v1285 = vpop.permute.xlu0 %1284
        %1286 = vrot.lane.b32.xlu0 %v623, 32
        %v1287 = vpop.permute.xlu0 %1286
        %1288 = vrot.lane.b32.xlu0 %v626, 32
        %v1289 = vpop.permute.xlu0 %1288
        %1290 = vrot.lane.b32.xlu0 %v628, 32
        %v1291 = vpop.permute.xlu0 %1290
        %1292 = vrot.lane.b32.xlu0 %v631, 32
        %v1293 = vpop.permute.xlu0 %1292
        %1294 = vrot.lane.b32.xlu0 %v633, 32
        %v1295 = vpop.permute.xlu0 %1294
        %1296 = vrot.lane.b32.xlu0 %v636, 32
        %v1297 = vpop.permute.xlu0 %1296
        %1298 = vrot.lane.b32.xlu0 %v638, 32
        %v1299 = vpop.permute.xlu0 %1298
        %1300 = vrot.lane.b32.xlu0 %v641, 32
        %v1301 = vpop.permute.xlu0 %1300
        %1302 = vrot.lane.b32.xlu0 %v643, 32
        %v1303 = vpop.permute.xlu0 %1302
        %1304 = vrot.lane.b32.xlu0 %v646, 32
        %v1305 = vpop.permute.xlu0 %1304
        %1306 = vrot.lane.b32.xlu0 %v648, 32
        %v1307 = vpop.permute.xlu0 %1306
        %1308 = vrot.lane.b32.xlu0 %v651, 32
        %v1309 = vpop.permute.xlu0 %1308
        %1310 = vrot.lane.b32.xlu0 %v653, 32
        %v1311 = vpop.permute.xlu0 %1310
        %1312 = vrot.lane.b32.xlu0 %v952, 32
        %v1313 = vpop.permute.xlu0 %1312
        %1314 = vrot.lane.b32.xlu0 %v954, 32
        %v1315 = vpop.permute.xlu0 %1314
        %1316 = vrot.lane.b32.xlu0 %v1253, 32
        %v1317 = vpop.permute.xlu0 %1316
        %1318 = vrot.lane.b32.xlu0 %v1255, 32
        %v1319 = vpop.permute.xlu0 %1318
        %vm1352 = vcmask 31744
        %v1353 = vsel %vm1352, %v294, %v478
        %v1354 = vsel %vm1352, %v295, %v480
        %v1355 = vsel %vm1352, %v297, %v482
        %v1356 = vsel %vm1352, %v298, %v484
        %v1357 = vsel %vm1352, %v300, %v486
        %v1358 = vsel %vm1352, %v301, %v488
        %v1359 = vsel %vm1352, %v303, %v490
        %v1360 = vsel %vm1352, %v304, %v492
        %v1361 = vsel %vm1352, %v306, %v494
        %v1362 = vsel %vm1352, %v307, %v496
        %v1363 = vsel %vm1352, %v309, %v498
        %v1364 = vsel %vm1352, %v310, %v500
        %v1365 = vsel %vm1352, %v312, %v502
        %v1366 = vsel %vm1352, %v313, %v504
        %v1367 = vsel %vm1352, %v315, %v506
        %v1368 = vsel %vm1352, %v316, %v508
        %v1369 = vsel %vm1352, %v318, %v510
        %v1370 = vsel %vm1352, %v319, %v512
        %v1371 = vsel %vm1352, %v321, %v514
        %v1372 = vsel %vm1352, %v322, %v516
        %v1373 = vsel %vm1352, %v324, %v518
        %v1374 = vsel %vm1352, %v325, %v520
        %v1375 = vsel %vm1352, %v327, %v522
        %v1376 = vsel %vm1352, %v328, %v524
        %v1377 = vsel %vm1352, %v330, %v526
        %v1378 = vsel %vm1352, %v331, %v528
        %v1379 = vsel %vm1352, %v333, %v530
        %v1380 = vsel %vm1352, %v334, %v532
        %v1381 = vsel %vm1352, %v336, %v534
        %v1382 = vsel %vm1352, %v337, %v536
        %v1383 = vsel %vm1352, %v339, %v538
        %v1384 = vsel %vm1352, %v340, %v540
        %vm1385 = vcmask 64512
        %v1386 = vsel %vm1385, %v1353, %v655
        %v1387 = vsel %vm1385, %v1354, %v657
        %v1388 = vsel %vm1385, %v1355, %v659
        %v1389 = vsel %vm1385, %v1356, %v661
        %v1390 = vsel %vm1385, %v1357, %v663
        %v1391 = vsel %vm1385, %v1358, %v665
        %v1392 = vsel %vm1385, %v1359, %v667
        %v1393 = vsel %vm1385, %v1360, %v669
        %v1394 = vsel %vm1385, %v1361, %v671
        %v1395 = vsel %vm1385, %v1362, %v673
        %v1396 = vsel %vm1385, %v1363, %v675
        %v1397 = vsel %vm1385, %v1364, %v677
        %v1398 = vsel %vm1385, %v1365, %v679
        %v1399 = vsel %vm1385, %v1366, %v681
        %v1400 = vsel %vm1385, %v1367, %v683
        %v1401 = vsel %vm1385, %v1368, %v685
        %v1402 = vsel %vm1385, %v1369, %v687
        %v1403 = vsel %vm1385, %v1370, %v689
        %v1404 = vsel %vm1385, %v1371, %v691
        %v1405 = vsel %vm1385, %v1372, %v693
        %v1406 = vsel %vm1385, %v1373, %v695
        %v1407 = vsel %vm1385, %v1374, %v697
        %v1408 = vsel %vm1385, %v1375, %v699
        %v1409 = vsel %vm1385, %v1376, %v701
        %v1410 = vsel %vm1385, %v1377, %v703
        %v1411 = vsel %vm1385, %v1378, %v705
        %v1412 = vsel %vm1385, %v1379, %v707
        %v1413 = vsel %vm1385, %v1380, %v709
        %v1414 = vsel %vm1385, %v1381, %v711
        %v1415 = vsel %vm1385, %v1382, %v713
        %v1416 = vsel %vm1385, %v1383, %v715
        %v1417 = vsel %vm1385, %v1384, %v717
        %vm1418 = vcmask 97280
        %v1419 = vsel %vm1418, %v1386, %v753
        %v1420 = vsel %vm1418, %v1387, %v755
        %v1421 = vsel %vm1418, %v1388, %v757
        %v1422 = vsel %vm1418, %v1389, %v759
        %v1423 = vsel %vm1418, %v1390, %v761
        %v1424 = vsel %vm1418, %v1391, %v763
        %v1425 = vsel %vm1418, %v1392, %v765
        %v1426 = vsel %vm1418, %v1393, %v767
        %v1427 = vsel %vm1418, %v1394, %v769
        %v1428 = vsel %vm1418, %v1395, %v771
        %v1429 = vsel %vm1418, %v1396, %v773
        %v1430 = vsel %vm1418, %v1397, %v775
        %v1431 = vsel %vm1418, %v1398, %v777
        %v1432 = vsel %vm1418, %v1399, %v779
        %v1433 = vsel %vm1418, %v1400, %v781
        %v1434 = vsel %vm1418, %v1401, %v783
        %v1435 = vsel %vm1418, %v1402, %v785
        %v1436 = vsel %vm1418, %v1403, %v787
        %v1437 = vsel %vm1418, %v1404, %v789
        %v1438 = vsel %vm1418, %v1405, %v791
        %v1439 = vsel %vm1418, %v1406, %v793
        %v1440 = vsel %vm1418, %v1407, %v795
        %v1441 = vsel %vm1418, %v1408, %v797
        %v1442 = vsel %vm1418, %v1409, %v799
        %v1443 = vsel %vm1418, %v1410, %v801
        %v1444 = vsel %vm1418, %v1411, %v803
        %v1445 = vsel %vm1418, %v1412, %v805
        %v1446 = vsel %vm1418, %v1413, %v807
        %v1447 = vsel %vm1418, %v1414, %v809
        %v1448 = vsel %vm1418, %v1415, %v811
        %v1449 = vsel %vm1418, %v1416, %v813
        %v1450 = vsel %vm1418, %v1417, %v815
        %vm1451 = vcmask 130048
        %v1452 = vsel %vm1451, %v1419, %v855
        %v1453 = vsel %vm1451, %v1420, %v857
        %v1454 = vsel %vm1451, %v1421, %v859
        %v1455 = vsel %vm1451, %v1422, %v861
        %v1456 = vsel %vm1451, %v1423, %v863
        %v1457 = vsel %vm1451, %v1424, %v865
        %v1458 = vsel %vm1451, %v1425, %v867
        %v1459 = vsel %vm1451, %v1426, %v869
        %v1460 = vsel %vm1451, %v1427, %v871
        %v1461 = vsel %vm1451, %v1428, %v873
        %v1462 = vsel %vm1451, %v1429, %v875
        %v1463 = vsel %vm1451, %v1430, %v877
        %v1464 = vsel %vm1451, %v1431, %v879
        %v1465 = vsel %vm1451, %v1432, %v881
        %v1466 = vsel %vm1451, %v1433, %v883
        %v1467 = vsel %vm1451, %v1434, %v885
        %v1468 = vsel %vm1451, %v1435, %v887
        %v1469 = vsel %vm1451, %v1436, %v889
        %v1470 = vsel %vm1451, %v1437, %v891
        %v1471 = vsel %vm1451, %v1438, %v893
        %v1472 = vsel %vm1451, %v1439, %v895
        %v1473 = vsel %vm1451, %v1440, %v897
        %v1474 = vsel %vm1451, %v1441, %v899
        %v1475 = vsel %vm1451, %v1442, %v901
        %v1476 = vsel %vm1451, %v1443, %v903
        %v1477 = vsel %vm1451, %v1444, %v905
        %v1478 = vsel %vm1451, %v1445, %v907
        %v1479 = vsel %vm1451, %v1446, %v909
        %v1480 = vsel %vm1451, %v1447, %v911
        %v1481 = vsel %vm1451, %v1448, %v913
        %v1482 = vsel %vm1451, %v1449, %v915
        %v1483 = vsel %vm1451, %v1450, %v917
        %vm1484 = vcmask 162816
        %v1485 = vsel %vm1484, %v1452, %v956
        %v1486 = vsel %vm1484, %v1453, %v958
        %v1487 = vsel %vm1484, %v1454, %v960
        %v1488 = vsel %vm1484, %v1455, %v962
        %v1489 = vsel %vm1484, %v1456, %v964
        %v1490 = vsel %vm1484, %v1457, %v966
        %v1491 = vsel %vm1484, %v1458, %v968
        %v1492 = vsel %vm1484, %v1459, %v970
        %v1493 = vsel %vm1484, %v1460, %v972
        %v1494 = vsel %vm1484, %v1461, %v974
        %v1495 = vsel %vm1484, %v1462, %v976
        %v1496 = vsel %vm1484, %v1463, %v978
        %v1497 = vsel %vm1484, %v1464, %v980
        %v1498 = vsel %vm1484, %v1465, %v982
        %v1499 = vsel %vm1484, %v1466, %v984
        %v1500 = vsel %vm1484, %v1467, %v986
        %v1501 = vsel %vm1484, %v1468, %v988
        %v1502 = vsel %vm1484, %v1469, %v990
        %v1503 = vsel %vm1484, %v1470, %v992
        %v1504 = vsel %vm1484, %v1471, %v994
        %v1505 = vsel %vm1484, %v1472, %v996
        %v1506 = vsel %vm1484, %v1473, %v998
        %v1507 = vsel %vm1484, %v1474, %v1000
        %v1508 = vsel %vm1484, %v1475, %v1002
        %v1509 = vsel %vm1484, %v1476, %v1004
        %v1510 = vsel %vm1484, %v1477, %v1006
        %v1511 = vsel %vm1484, %v1478, %v1008
        %v1512 = vsel %vm1484, %v1479, %v1010
        %v1513 = vsel %vm1484, %v1480, %v1012
        %v1514 = vsel %vm1484, %v1481, %v1014
        %v1515 = vsel %vm1484, %v1482, %v1016
        %v1516 = vsel %vm1484, %v1483, %v1018
        %vm1517 = vcmask 195584
        %v1518 = vsel %vm1517, %v1485, %v1054
        %v1519 = vsel %vm1517, %v1486, %v1056
        %v1520 = vsel %vm1517, %v1487, %v1058
        %v1521 = vsel %vm1517, %v1488, %v1060
        %v1522 = vsel %vm1517, %v1489, %v1062
        %v1523 = vsel %vm1517, %v1490, %v1064
        %v1524 = vsel %vm1517, %v1491, %v1066
        %v1525 = vsel %vm1517, %v1492, %v1068
        %v1526 = vsel %vm1517, %v1493, %v1070
        %v1527 = vsel %vm1517, %v1494, %v1072
        %v1528 = vsel %vm1517, %v1495, %v1074
        %v1529 = vsel %vm1517, %v1496, %v1076
        %v1530 = vsel %vm1517, %v1497, %v1078
        %v1531 = vsel %vm1517, %v1498, %v1080
        %v1532 = vsel %vm1517, %v1499, %v1082
        %v1533 = vsel %vm1517, %v1500, %v1084
        %v1534 = vsel %vm1517, %v1501, %v1086
        %v1535 = vsel %vm1517, %v1502, %v1088
        %v1536 = vsel %vm1517, %v1503, %v1090
        %v1537 = vsel %vm1517, %v1504, %v1092
        %v1538 = vsel %vm1517, %v1505, %v1094
        %v1539 = vsel %vm1517, %v1506, %v1096
        %v1540 = vsel %vm1517, %v1507, %v1098
        %v1541 = vsel %vm1517, %v1508, %v1100
        %v1542 = vsel %vm1517, %v1509, %v1102
        %v1543 = vsel %vm1517, %v1510, %v1104
        %v1544 = vsel %vm1517, %v1511, %v1106
        %v1545 = vsel %vm1517, %v1512, %v1108
        %v1546 = vsel %vm1517, %v1513, %v1110
        %v1547 = vsel %vm1517, %v1514, %v1112
        %v1548 = vsel %vm1517, %v1515, %v1114
        %v1549 = vsel %vm1517, %v1516, %v1116
        %vm1550 = vcmask 228352
        %v1551 = vsel %vm1550, %v1518, %v1156
        %v1552 = vsel %vm1550, %v1519, %v1158
        %v1553 = vsel %vm1550, %v1520, %v1160
        %v1554 = vsel %vm1550, %v1521, %v1162
        %v1555 = vsel %vm1550, %v1522, %v1164
        %v1556 = vsel %vm1550, %v1523, %v1166
        %v1557 = vsel %vm1550, %v1524, %v1168
        %v1558 = vsel %vm1550, %v1525, %v1170
        %v1559 = vsel %vm1550, %v1526, %v1172
        %v1560 = vsel %vm1550, %v1527, %v1174
        %v1561 = vsel %vm1550, %v1528, %v1176
        %v1562 = vsel %vm1550, %v1529, %v1178
        %v1563 = vsel %vm1550, %v1530, %v1180
        %v1564 = vsel %vm1550, %v1531, %v1182
        %v1565 = vsel %vm1550, %v1532, %v1184
        %v1566 = vsel %vm1550, %v1533, %v1186
        %v1567 = vsel %vm1550, %v1534, %v1188
        %v1568 = vsel %vm1550, %v1535, %v1190
        %v1569 = vsel %vm1550, %v1536, %v1192
        %v1570 = vsel %vm1550, %v1537, %v1194
        %v1571 = vsel %vm1550, %v1538, %v1196
        %v1572 = vsel %vm1550, %v1539, %v1198
        %v1573 = vsel %vm1550, %v1540, %v1200
        %v1574 = vsel %vm1550, %v1541, %v1202
        %v1575 = vsel %vm1550, %v1542, %v1204
        %v1576 = vsel %vm1550, %v1543, %v1206
        %v1577 = vsel %vm1550, %v1544, %v1208
        %v1578 = vsel %vm1550, %v1545, %v1210
        %v1579 = vsel %vm1550, %v1546, %v1212
        %v1580 = vsel %vm1550, %v1547, %v1214
        %v1581 = vsel %vm1550, %v1548, %v1216
        %v1582 = vsel %vm1550, %v1549, %v1218
        %vm1583 = vcmask 261120
        %v1584 = vsel %vm1583, %v1551, %v1257
        %v1585 = vsel %vm1583, %v1552, %v1259
        %v1586 = vsel %vm1583, %v1553, %v1261
        %v1587 = vsel %vm1583, %v1554, %v1263
        %v1588 = vsel %vm1583, %v1555, %v1265
        %v1589 = vsel %vm1583, %v1556, %v1267
        %v1590 = vsel %vm1583, %v1557, %v1269
        %v1591 = vsel %vm1583, %v1558, %v1271
        %v1592 = vsel %vm1583, %v1559, %v1273
        %v1593 = vsel %vm1583, %v1560, %v1275
        %v1594 = vsel %vm1583, %v1561, %v1277
        %v1595 = vsel %vm1583, %v1562, %v1279
        %v1596 = vsel %vm1583, %v1563, %v1281
        %v1597 = vsel %vm1583, %v1564, %v1283
        %v1598 = vsel %vm1583, %v1565, %v1285
        %v1599 = vsel %vm1583, %v1566, %v1287
        %v1600 = vsel %vm1583, %v1567, %v1289
        %v1601 = vsel %vm1583, %v1568, %v1291
        %v1602 = vsel %vm1583, %v1569, %v1293
        %v1603 = vsel %vm1583, %v1570, %v1295
        %v1604 = vsel %vm1583, %v1571, %v1297
        %v1605 = vsel %vm1583, %v1572, %v1299
        %v1606 = vsel %vm1583, %v1573, %v1301
        %v1607 = vsel %vm1583, %v1574, %v1303
        %v1608 = vsel %vm1583, %v1575, %v1305
        %v1609 = vsel %vm1583, %v1576, %v1307
        %v1610 = vsel %vm1583, %v1577, %v1309
        %v1611 = vsel %vm1583, %v1578, %v1311
        %v1612 = vsel %vm1583, %v1579, %v1313
        %v1613 = vsel %vm1583, %v1580, %v1315
        %v1614 = vsel %vm1583, %v1581, %v1317
        %v1615 = vsel %vm1583, %v1582, %v1319
        %v1616 = vld [vmem:[#allocation5] sm:$0xff]
        %v1617 = vld [vmem:[#allocation5 + $0x8] sm:$0xff]
        %v1618 = vld [vmem:[#allocation5 + $0x10] sm:$0xff]
        %v1619 = vld [vmem:[#allocation5 + $0x18] sm:$0xff]
        %v1620 = vld [vmem:[#allocation5 + $0x20] sm:$0xf]
        %v1621 = vld [vmem:[#allocation7] sm:$0x1]
        %v1623 = vlaneseq
        %v1624 = vshrl.u32 %v1623, 7
        %v1625 = vsub.s32 0, %v1624
        %v1626 = vrot.slane %v1621, %v1625
        %vm1628 = vcmask 293888
        %v1630 = vsel %vm1628, %v1584, 0
        %v1633 = vsel %vm1628, %v1585, 0
        %v1636 = vsel %vm1628, %v1586, 0
        %v1639 = vsel %vm1628, %v1587, 0
        %v1642 = vsel %vm1628, %v1588, 0
        %v1645 = vsel %vm1628, %v1589, 0
        %v1648 = vsel %vm1628, %v1590, 0
        %v1651 = vsel %vm1628, %v1591, 0
        %v1654 = vsel %vm1628, %v1592, 0
        %v1657 = vsel %vm1628, %v1593, 0
        %v1660 = vsel %vm1628, %v1594, 0
        %v1663 = vsel %vm1628, %v1595, 0
        %v1666 = vsel %vm1628, %v1596, 0
        %v1669 = vsel %vm1628, %v1597, 0
        %v1672 = vsel %vm1628, %v1598, 0
        %v1675 = vsel %vm1628, %v1599, 0
        %v1678 = vsel %vm1628, %v1600, 0
        %v1681 = vsel %vm1628, %v1601, 0
        %v1684 = vsel %vm1628, %v1602, 0
        %v1687 = vsel %vm1628, %v1603, 0
        %v1690 = vsel %vm1628, %v1604, 0
        %v1693 = vsel %vm1628, %v1605, 0
        %v1696 = vsel %vm1628, %v1606, 0
        %v1699 = vsel %vm1628, %v1607, 0
        %v1702 = vsel %vm1628, %v1608, 0
        %v1705 = vsel %vm1628, %v1609, 0
        %v1708 = vsel %vm1628, %v1610, 0
        %v1711 = vsel %vm1628, %v1611, 0
        %v1714 = vsel %vm1628, %v1612, 0
        %v1717 = vsel %vm1628, %v1613, 0
        %v1720 = vsel %vm1628, %v1614, 0
        %v1723 = vsel %vm1628, %v1615, 0
        %vm1725 = vcmask 1043456
        %v1727 = vsel %vm1725, %v1620, 0
        %1729 = vmatprep.subr.mxu0 0.0
        %1730 = vmatpush1.msra.mxu0 %v1616
        %1731 = vmatprep.subr.mxu0 0.0
        %1732 = vmatpush1.msra.mxu0 %v1617
        %1733 = vmatprep.subr.mxu0 0.0
        %1734 = vmatpush1.msra.mxu0 %v1618
        %1735 = vmatprep.subr.mxu0 0.0
        %1736 = vmatpush1.msra.mxu0 %v1619
        %1737 = vmatprep.subr.mxu0 0.0
        %1738 = vmatpush1.msra.mxu0 %v1727
        %1739 = vmatprep.subr.mxu0 0.0
        %1740 = vmatpush1.msra.mxu0 0.0
        %1741 = vmatprep.subr.mxu0 0.0
        %1742 = vmatpush1.msra.mxu0 0.0
        %1743 = vmatprep.subr.mxu0 0.0
        %1744 = vmatpush1.msra.mxu0 0.0
        %1745 = vmatprep.subr.mxu0 0.0
        %1746 = vmatpush1.msra.mxu0 0.0
        %1747 = vmatprep.subr.mxu0 0.0
        %1748 = vmatpush1.msra.mxu0 0.0
        %1749 = vmatprep.subr.mxu0 0.0
        %1750 = vmatpush1.msra.mxu0 0.0
        %1751 = vmatprep.subr.mxu0 0.0
        %1752 = vmatpush1.msra.mxu0 0.0
        %1753 = vmatprep.subr.mxu0 0.0
        %1754 = vmatpush1.msra.mxu0 0.0
        %1755 = vmatprep.subr.mxu0 0.0
        %1756 = vmatpush1.msra.mxu0 0.0
        %1757 = vmatprep.subr.mxu0 0.0
        %1758 = vmatpush1.msra.mxu0 0.0
        %1759 = vmatprep.subr.mxu0 0.0
        %1760 = vmatpush1.msra.mxu0 0.0
        %1761 = vmatprep.subr.mxu0 0.0
        %1762 = vmatpush1.msra.mxu0 0.0
        %1763 = vmatprep.subr.mxu0 0.0
        %1764 = vmatpush1.msra.mxu0 0.0
        %1765 = vmatprep.subr.mxu0 0.0
        %1766 = vmatpush1.msra.mxu0 0.0
        %1767 = vmatprep.subr.mxu0 0.0
        %1768 = vmatpush1.msra.mxu0 0.0
        %1769 = vmatprep.subr.mxu0 0.0
        %1770 = vmatpush1.msra.mxu0 0.0
        %1771 = vmatprep.subr.mxu0 0.0
        %1772 = vmatpush1.msra.mxu0 0.0
        %1773 = vmatprep.subr.mxu0 0.0
        %1774 = vmatpush1.msra.mxu0 0.0
        %1775 = vmatprep.subr.mxu0 0.0
        %1776 = vmatpush1.msra.mxu0 0.0
        %1777 = vmatprep.subr.mxu0 0.0
        %1778 = vmatpush1.msra.mxu0 0.0
        %1779 = vmatprep.subr.mxu0 0.0
        %1780 = vmatpush1.msra.mxu0 0.0
        %1781 = vmatprep.subr.mxu0 0.0
        %1782 = vmatpush1.msra.mxu0 0.0
        %1783 = vmatprep.subr.mxu0 0.0
        %1784 = vmatpush1.msra.mxu0 0.0
        %1785 = vmatprep.subr.mxu0 0.0
        %1786 = vmatpush1.msra.mxu0 0.0
        %1787 = vmatprep.subr.mxu0 0.0
        %1788 = vmatpush1.msra.mxu0 0.0
        %1789 = vmatprep.subr.mxu0 0.0
        %1790 = vmatpush1.msra.mxu0 0.0
        %1791 = vmatprep.subr.mxu0 0.0
        %1792 = vmatpush1.msra.mxu0 0.0
        %1793 = vmatprep.mubr.f32.mxu0 0.0
        %1794 = vmatmul.mubr.f32.gmra.mrb[0].mxu0 %v1630
        %v1795 = vpop.f32.mrb[0].mxu0
        %v1796 = vadd.f32 %v1626, %v1795
        %v1797 = vpop.f32.mrb[0].mxu0
        %1798 = vmatprep.mubr.f32.mxu0 0.0
        %1799 = vmatmul.mubr.f32.gmra.mrb[0].mxu0 %v1633
        %v1800 = vpop.f32.mrb[0].mxu0
        %v1801 = vadd.f32 %v1626, %v1800
        %v1802 = vpop.f32.mrb[0].mxu0
        %1803 = vmatprep.mubr.f32.mxu0 0.0
        %1804 = vmatmul.mubr.f32.gmra.mrb[0].mxu0 %v1636
        %v1805 = vpop.f32.mrb[0].mxu0
        %v1806 = vadd.f32 %v1626, %v1805
        %v1807 = vpop.f32.mrb[0].mxu0
        %1808 = vmatprep.mubr.f32.mxu0 0.0
        %1809 = vmatmul.mubr.f32.gmra.mrb[0].mxu0 %v1639
        %v1810 = vpop.f32.mrb[0].mxu0
        %v1811 = vadd.f32 %v1626, %v1810
        %v1812 = vpop.f32.mrb[0].mxu0
        %1813 = vmatprep.mubr.f32.mxu0 0.0
        %1814 = vmatmul.mubr.f32.gmra.mrb[0].mxu0 %v1642
        %v1815 = vpop.f32.mrb[0].mxu0
        %v1816 = vadd.f32 %v1626, %v1815
        %v1817 = vpop.f32.mrb[0].mxu0
        %1818 = vmatprep.mubr.f32.mxu0 0.0
        %1819 = vmatmul.mubr.f32.gmra.mrb[0].mxu0 %v1645
        %v1820 = vpop.f32.mrb[0].mxu0
        %v1821 = vadd.f32 %v1626, %v1820
        %v1822 = vpop.f32.mrb[0].mxu0
        %1823 = vmatprep.mubr.f32.mxu0 0.0
        %1824 = vmatmul.mubr.f32.gmra.mrb[0].mxu0 %v1648
        %v1825 = vpop.f32.mrb[0].mxu0
        %v1826 = vadd.f32 %v1626, %v1825
        %v1827 = vpop.f32.mrb[0].mxu0
        %1828 = vmatprep.mubr.f32.mxu0 0.0
        %1829 = vmatmul.mubr.f32.gmra.mrb[0].mxu0 %v1651
        %v1830 = vpop.f32.mrb[0].mxu0
        %v1831 = vadd.f32 %v1626, %v1830
        %v1832 = vpop.f32.mrb[0].mxu0
        %1833 = vmatprep.mubr.f32.mxu0 0.0
        %1834 = vmatmul.mubr.f32.gmra.mrb[0].mxu0 %v1654
        %v1835 = vpop.f32.mrb[0].mxu0
        %v1836 = vadd.f32 %v1626, %v1835
        %v1837 = vpop.f32.mrb[0].mxu0
        %1838 = vmatprep.mubr.f32.mxu0 0.0
        %1839 = vmatmul.mubr.f32.gmra.mrb[0].mxu0 %v1657
        %v1840 = vpop.f32.mrb[0].mxu0
        %v1841 = vadd.f32 %v1626, %v1840
        %v1842 = vpop.f32.mrb[0].mxu0
        %1843 = vmatprep.mubr.f32.mxu0 0.0
        %1844 = vmatmul.mubr.f32.gmra.mrb[0].mxu0 %v1660
        %v1845 = vpop.f32.mrb[0].mxu0
        %v1846 = vadd.f32 %v1626, %v1845
        %v1847 = vpop.f32.mrb[0].mxu0
        %1848 = vmatprep.mubr.f32.mxu0 0.0
        %1849 = vmatmul.mubr.f32.gmra.mrb[0].mxu0 %v1663
        %v1850 = vpop.f32.mrb[0].mxu0
        %v1851 = vadd.f32 %v1626, %v1850
        %v1852 = vpop.f32.mrb[0].mxu0
        %1853 = vmatprep.mubr.f32.mxu0 0.0
        %1854 = vmatmul.mubr.f32.gmra.mrb[0].mxu0 %v1666
        %v1855 = vpop.f32.mrb[0].mxu0
        %v1856 = vadd.f32 %v1626, %v1855
        %v1857 = vpop.f32.mrb[0].mxu0
        %1858 = vmatprep.mubr.f32.mxu0 0.0
        %1859 = vmatmul.mubr.f32.gmra.mrb[0].mxu0 %v1669
        %v1860 = vpop.f32.mrb[0].mxu0
        %v1861 = vadd.f32 %v1626, %v1860
        %v1862 = vpop.f32.mrb[0].mxu0
        %1863 = vmatprep.mubr.f32.mxu0 0.0
        %1864 = vmatmul.mubr.f32.gmra.mrb[0].mxu0 %v1672
        %v1865 = vpop.f32.mrb[0].mxu0
        %v1866 = vadd.f32 %v1626, %v1865
        %v1867 = vpop.f32.mrb[0].mxu0
        %1868 = vmatprep.mubr.f32.mxu0 0.0
        %1869 = vmatmul.mubr.f32.gmra.mrb[0].mxu0 %v1675
        %v1870 = vpop.f32.mrb[0].mxu0
        %v1871 = vadd.f32 %v1626, %v1870
        %v1872 = vpop.f32.mrb[0].mxu0
        %1873 = vmatprep.mubr.f32.mxu0 0.0
        %1874 = vmatmul.mubr.f32.gmra.mrb[0].mxu0 %v1678
        %v1875 = vpop.f32.mrb[0].mxu0
        %v1876 = vadd.f32 %v1626, %v1875
        %v1877 = vpop.f32.mrb[0].mxu0
        %1878 = vmatprep.mubr.f32.mxu0 0.0
        %1879 = vmatmul.mubr.f32.gmra.mrb[0].mxu0 %v1681
        %v1880 = vpop.f32.mrb[0].mxu0
        %v1881 = vadd.f32 %v1626, %v1880
        %v1882 = vpop.f32.mrb[0].mxu0
        %1883 = vmatprep.mubr.f32.mxu0 0.0
        %1884 = vmatmul.mubr.f32.gmra.mrb[0].mxu0 %v1684
        %v1885 = vpop.f32.mrb[0].mxu0
        %v1886 = vadd.f32 %v1626, %v1885
        %v1887 = vpop.f32.mrb[0].mxu0
        %1888 = vmatprep.mubr.f32.mxu0 0.0
        %1889 = vmatmul.mubr.f32.gmra.mrb[0].mxu0 %v1687
        %v1890 = vpop.f32.mrb[0].mxu0
        %v1891 = vadd.f32 %v1626, %v1890
        %v1892 = vpop.f32.mrb[0].mxu0
        %1893 = vmatprep.mubr.f32.mxu0 0.0
        %1894 = vmatmul.mubr.f32.gmra.mrb[0].mxu0 %v1690
        %v1895 = vpop.f32.mrb[0].mxu0
        %v1896 = vadd.f32 %v1626, %v1895
        %v1897 = vpop.f32.mrb[0].mxu0
        %1898 = vmatprep.mubr.f32.mxu0 0.0
        %1899 = vmatmul.mubr.f32.gmra.mrb[0].mxu0 %v1693
        %v1900 = vpop.f32.mrb[0].mxu0
        %v1901 = vadd.f32 %v1626, %v1900
        %v1902 = vpop.f32.mrb[0].mxu0
        %1903 = vmatprep.mubr.f32.mxu0 0.0
        %1904 = vmatmul.mubr.f32.gmra.mrb[0].mxu0 %v1696
        %v1905 = vpop.f32.mrb[0].mxu0
        %v1906 = vadd.f32 %v1626, %v1905
        %v1907 = vpop.f32.mrb[0].mxu0
        %1908 = vmatprep.mubr.f32.mxu0 0.0
        %1909 = vmatmul.mubr.f32.gmra.mrb[0].mxu0 %v1699
        %v1910 = vpop.f32.mrb[0].mxu0
        %v1911 = vadd.f32 %v1626, %v1910
        %v1912 = vpop.f32.mrb[0].mxu0
        %1913 = vmatprep.mubr.f32.mxu0 0.0
        %1914 = vmatmul.mubr.f32.gmra.mrb[0].mxu0 %v1702
        %v1915 = vpop.f32.mrb[0].mxu0
        %v1916 = vadd.f32 %v1626, %v1915
        %v1917 = vpop.f32.mrb[0].mxu0
        %1918 = vmatprep.mubr.f32.mxu0 0.0
        %1919 = vmatmul.mubr.f32.gmra.mrb[0].mxu0 %v1705
        %v1920 = vpop.f32.mrb[0].mxu0
        %v1921 = vadd.f32 %v1626, %v1920
        %v1922 = vpop.f32.mrb[0].mxu0
        %1923 = vmatprep.mubr.f32.mxu0 0.0
        %1924 = vmatmul.mubr.f32.gmra.mrb[0].mxu0 %v1708
        %v1925 = vpop.f32.mrb[0].mxu0
        %v1926 = vadd.f32 %v1626, %v1925
        %v1927 = vpop.f32.mrb[0].mxu0
        %1928 = vmatprep.mubr.f32.mxu0 0.0
        %1929 = vmatmul.mubr.f32.gmra.mrb[0].mxu0 %v1711
        %v1930 = vpop.f32.mrb[0].mxu0
        %v1931 = vadd.f32 %v1626, %v1930
        %v1932 = vpop.f32.mrb[0].mxu0
        %1933 = vmatprep.mubr.f32.mxu0 0.0
        %1934 = vmatmul.mubr.f32.gmra.mrb[0].mxu0 %v1714
        %v1935 = vpop.f32.mrb[0].mxu0
        %v1936 = vadd.f32 %v1626, %v1935
        %v1937 = vpop.f32.mrb[0].mxu0
        %1938 = vmatprep.mubr.f32.mxu0 0.0
        %1939 = vmatmul.mubr.f32.gmra.mrb[0].mxu0 %v1717
        %v1940 = vpop.f32.mrb[0].mxu0
        %v1941 = vadd.f32 %v1626, %v1940
        %v1942 = vpop.f32.mrb[0].mxu0
        %1943 = vmatprep.mubr.f32.mxu0 0.0
        %1944 = vmatmul.mubr.f32.gmra.mrb[0].mxu0 %v1720
        %v1945 = vpop.f32.mrb[0].mxu0
        %v1946 = vadd.f32 %v1626, %v1945
        %v1947 = vpop.f32.mrb[0].mxu0
        %1948 = vmatprep.mubr.f32.mxu0 0.0
        %1949 = vmatmul.mubr.f32.gmra.mrb[0].mxu0 %v1723
        %v1950 = vpop.f32.mrb[0].mxu0
        %v1951 = vadd.f32 %v1626, %v1950
        %v1952 = vpop.f32.mrb[0].mxu0
        %1953 = vdwg.mxu0
        %v1954 = vmax.f32 %v1796, 0.0
        %v1955 = vmax.f32 %v1801, 0.0
        %v1956 = vmax.f32 %v1806, 0.0
        %v1957 = vmax.f32 %v1811, 0.0
        %v1958 = vmax.f32 %v1816, 0.0
        %v1959 = vmax.f32 %v1821, 0.0
        %v1960 = vmax.f32 %v1826, 0.0
        %v1961 = vmax.f32 %v1831, 0.0
        %v1962 = vmax.f32 %v1836, 0.0
        %v1963 = vmax.f32 %v1841, 0.0
        %v1964 = vmax.f32 %v1846, 0.0
        %v1965 = vmax.f32 %v1851, 0.0
        %v1966 = vmax.f32 %v1856, 0.0
        %v1967 = vmax.f32 %v1861, 0.0
        %v1968 = vmax.f32 %v1866, 0.0
        %v1969 = vmax.f32 %v1871, 0.0
        %v1970 = vmax.f32 %v1876, 0.0
        %v1971 = vmax.f32 %v1881, 0.0
        %v1972 = vmax.f32 %v1886, 0.0
        %v1973 = vmax.f32 %v1891, 0.0
        %v1974 = vmax.f32 %v1896, 0.0
        %v1975 = vmax.f32 %v1901, 0.0
        %v1976 = vmax.f32 %v1906, 0.0
        %v1977 = vmax.f32 %v1911, 0.0
        %v1978 = vmax.f32 %v1916, 0.0
        %v1979 = vmax.f32 %v1921, 0.0
        %v1980 = vmax.f32 %v1926, 0.0
        %v1981 = vmax.f32 %v1931, 0.0
        %v1982 = vmax.f32 %v1936, 0.0
        %v1983 = vmax.f32 %v1941, 0.0
        %v1984 = vmax.f32 %v1946, 0.0
        %v1985 = vmax.f32 %v1951, 0.0
        %v1986 = vsel %vm1385, %v1954, 0.0
        %v1987 = vsel %vm1385, %v1955, 0.0
        %v1988 = vadd.f32 %v1986, %v1987
        %v1989 = vsel %vm1385, %v1956, 0.0
        %v1990 = vadd.f32 %v1988, %v1989
        %v1991 = vsel %vm1385, %v1957, 0.0
        %v1992 = vadd.f32 %v1990, %v1991
        %v1993 = vsel %vm1385, %v1958, 0.0
        %v1994 = vadd.f32 %v1992, %v1993
        %v1995 = vsel %vm1385, %v1959, 0.0
        %v1996 = vadd.f32 %v1994, %v1995
        %v1997 = vsel %vm1385, %v1960, 0.0
        %v1998 = vadd.f32 %v1996, %v1997
        %v1999 = vsel %vm1385, %v1961, 0.0
        %v2000 = vadd.f32 %v1998, %v1999
        %v2001 = vsel %vm1385, %v1962, 0.0
        %v2002 = vadd.f32 %v2000, %v2001
        %v2003 = vsel %vm1385, %v1963, 0.0
        %v2004 = vadd.f32 %v2002, %v2003
        %v2005 = vsel %vm1385, %v1964, 0.0
        %v2006 = vadd.f32 %v2004, %v2005
        %v2007 = vsel %vm1385, %v1965, 0.0
        %v2008 = vadd.f32 %v2006, %v2007
        %v2009 = vsel %vm1385, %v1966, 0.0
        %v2010 = vadd.f32 %v2008, %v2009
        %v2011 = vsel %vm1385, %v1967, 0.0
        %v2012 = vadd.f32 %v2010, %v2011
        %v2013 = vsel %vm1385, %v1968, 0.0
        %v2014 = vadd.f32 %v2012, %v2013
        %v2015 = vsel %vm1385, %v1969, 0.0
        %v2016 = vadd.f32 %v2014, %v2015
        %v2017 = vsel %vm1385, %v1970, 0.0
        %v2018 = vadd.f32 %v2016, %v2017
        %v2019 = vsel %vm1385, %v1971, 0.0
        %v2020 = vadd.f32 %v2018, %v2019
        %v2021 = vsel %vm1385, %v1972, 0.0
        %v2022 = vadd.f32 %v2020, %v2021
        %v2023 = vsel %vm1385, %v1973, 0.0
        %v2024 = vadd.f32 %v2022, %v2023
        %v2025 = vsel %vm1385, %v1974, 0.0
        %v2026 = vadd.f32 %v2024, %v2025
        %v2027 = vsel %vm1385, %v1975, 0.0
        %v2028 = vadd.f32 %v2026, %v2027
        %v2029 = vsel %vm1385, %v1976, 0.0
        %v2030 = vadd.f32 %v2028, %v2029
        %v2031 = vsel %vm1385, %v1977, 0.0
        %v2032 = vadd.f32 %v2030, %v2031
        %v2033 = vsel %vm1385, %v1978, 0.0
        %v2034 = vadd.f32 %v2032, %v2033
        %v2035 = vsel %vm1385, %v1979, 0.0
        %v2036 = vadd.f32 %v2034, %v2035
        %v2037 = vsel %vm1385, %v1980, 0.0
        %v2038 = vadd.f32 %v2036, %v2037
        %v2039 = vsel %vm1385, %v1981, 0.0
        %v2040 = vadd.f32 %v2038, %v2039
        %v2041 = vsel %vm1385, %v1982, 0.0
        %v2042 = vadd.f32 %v2040, %v2041
        %v2043 = vsel %vm1385, %v1983, 0.0
        %v2044 = vadd.f32 %v2042, %v2043
        %v2045 = vsel %vm1385, %v1984, 0.0
        %v2046 = vadd.f32 %v2044, %v2045
        %v2047 = vsel %vm1385, %v1985, 0.0
        %v2048 = vadd.f32 %v2046, %v2047
        %v2049 = vrot.slane %v2048, 4
        %v2050 = vadd.f32 %v2048, %v2049
        %v2051 = vrot.slane %v2050, 2
        %v2052 = vadd.f32 %v2050, %v2051
        %v2053 = vrot.slane %v2052, 1
        %v2054 = vadd.f32 %v2052, %v2053
        %v2055 = vmul.f32 %v2054, 0.00390625
        %v2056 = vld [vmem:[#allocation8] sm:$0xff]
        %v2057 = vld [vmem:[#allocation10] sm:$0x1]
        %v2059 = vsel %vm1385, %v2055, 0
        %2061 = vmatprep.subr.mxu0 0.0
        %2062 = vmatpush1.msra.mxu0 %v2056
        %2063 = vmatprep.subr.mxu0 0.0
        %2064 = vmatpush1.msra.mxu0 0.0
        %2065 = vmatprep.subr.mxu0 0.0
        %2066 = vmatpush1.msra.mxu0 0.0
        %2067 = vmatprep.subr.mxu0 0.0
        %2068 = vmatpush1.msra.mxu0 0.0
        %2069 = vmatprep.subr.mxu0 0.0
        %2070 = vmatpush1.msra.mxu0 0.0
        %2071 = vmatprep.subr.mxu0 0.0
        %2072 = vmatpush1.msra.mxu0 0.0
        %2073 = vmatprep.subr.mxu0 0.0
        %2074 = vmatpush1.msra.mxu0 0.0
        %2075 = vmatprep.subr.mxu0 0.0
        %2076 = vmatpush1.msra.mxu0 0.0
        %2077 = vmatprep.subr.mxu0 0.0
        %2078 = vmatpush1.msra.mxu0 0.0
        %2079 = vmatprep.subr.mxu0 0.0
        %2080 = vmatpush1.msra.mxu0 0.0
        %2081 = vmatprep.subr.mxu0 0.0
        %2082 = vmatpush1.msra.mxu0 0.0
        %2083 = vmatprep.subr.mxu0 0.0
        %2084 = vmatpush1.msra.mxu0 0.0
        %2085 = vmatprep.subr.mxu0 0.0
        %2086 = vmatpush1.msra.mxu0 0.0
        %2087 = vmatprep.subr.mxu0 0.0
        %2088 = vmatpush1.msra.mxu0 0.0
        %2089 = vmatprep.subr.mxu0 0.0
        %2090 = vmatpush1.msra.mxu0 0.0
        %2091 = vmatprep.subr.mxu0 0.0
        %2092 = vmatpush1.msra.mxu0 0.0
        %2093 = vmatprep.subr.mxu0 0.0
        %2094 = vmatpush1.msra.mxu0 0.0
        %2095 = vmatprep.subr.mxu0 0.0
        %2096 = vmatpush1.msra.mxu0 0.0
        %2097 = vmatprep.subr.mxu0 0.0
        %2098 = vmatpush1.msra.mxu0 0.0
        %2099 = vmatprep.subr.mxu0 0.0
        %2100 = vmatpush1.msra.mxu0 0.0
        %2101 = vmatprep.subr.mxu0 0.0
        %2102 = vmatpush1.msra.mxu0 0.0
        %2103 = vmatprep.subr.mxu0 0.0
        %2104 = vmatpush1.msra.mxu0 0.0
        %2105 = vmatprep.subr.mxu0 0.0
        %2106 = vmatpush1.msra.mxu0 0.0
        %2107 = vmatprep.subr.mxu0 0.0
        %2108 = vmatpush1.msra.mxu0 0.0
        %2109 = vmatprep.subr.mxu0 0.0
        %2110 = vmatpush1.msra.mxu0 0.0
        %2111 = vmatprep.subr.mxu0 0.0
        %2112 = vmatpush1.msra.mxu0 0.0
        %2113 = vmatprep.subr.mxu0 0.0
        %2114 = vmatpush1.msra.mxu0 0.0
        %2115 = vmatprep.subr.mxu0 0.0
        %2116 = vmatpush1.msra.mxu0 0.0
        %2117 = vmatprep.subr.mxu0 0.0
        %2118 = vmatpush1.msra.mxu0 0.0
        %2119 = vmatprep.subr.mxu0 0.0
        %2120 = vmatpush1.msra.mxu0 0.0
        %2121 = vmatprep.subr.mxu0 0.0
        %2122 = vmatpush1.msra.mxu0 0.0
        %2123 = vmatprep.subr.mxu0 0.0
        %2124 = vmatpush1.msra.mxu0 0.0
        %2125 = vmatprep.mubr.f32.mxu0 0.0
        %2126 = vmatmul.mubr.f32.gmra.mrb[0].mxu0 %v2059
        %v2127 = vpop.f32.mrb[0].mxu0
        %v2128 = vadd.f32 %v2057, %v2127
        %v2129 = vpop.f32.mrb[0].mxu0
        %2130 = vdwg.mxu0
        %2131 = vst [vmem:[%s293] sm:$0x1] %v2128
        %s2132 = sand.u32 %s142, 1
        %s2133 = scalar_lea.sflag [#allocation4], %s2132
        %s2134 = sand.u32 %s142, 1
        %s2135 = scalar_lea.vmem [#allocation11], %s2134
        // Predicated region
        $region61: #{_forward_impl.1} parent=39 // pred_check
          %p2136 = pneg %p152
        $region62: #{_forward_impl.1} parent=39 // pred_check_branch
          %2138 = sbr.rel (%p2136) target = $region64
        $region63: #{_forward_impl.1} parent=39 // pred_region
          %s2140 = ssub.s32 16, 16
          %2141 = vsyncadd %s2133, %s2140
          %s2142 = smul.addr %s24, 16
          %s2143 = scalar_lea.hbm %s5, %s2142
          %s2145 = sshll.u32 %s2135, 4
          %s2146 = int_to_ptr.vmem [resolvable:$true] %s2145
          %2148 = dma.vmem_to_hbm [thread:$0]  %s2146, 16, %s2143, %s2133
        $region64: #{_forward_impl.1} parent=39 // pred_fallthru
          _
      $region40: #{_forward_impl.1} parent=5 // pred_fallthru
        _
      %p2149 = scmp.le.s32.totalorder 2, %s19
      // Predicated region
      $region65: #{_forward_impl.1} parent=5 // pred_check
        %p2150 = pneg %p2149
      $region66: #{_forward_impl.1} parent=5 // pred_check_branch
        %2152 = sbr.rel (%p2150) target = $region68
      $region67: #{_forward_impl.1} parent=5 // pred_region
        %s2153 = ssub.s32 %s19, 2
        // Predicated region
        $region69: #{_forward_impl.1} parent=67 // pred_check
          %p2154 = pneg %p158
        $region70: #{_forward_impl.1} parent=67 // pred_check_branch
          %2156 = sbr.rel (%p2154) target = $region72
        $region71: #{_forward_impl.1} parent=67 // pred_region
          %s2157 = sand.u32 %s143, 1
          %s2158 = scalar_lea.sflag [#allocation4], %s2157
          %s2159 = sand.u32 %s143, 1
          %s2160 = scalar_lea.vmem [#allocation11], %s2159
          %2161 = dma.done %s2158, 16
        $region72: #{_forward_impl.1} parent=67 // pred_fallthru
          _
      $region68: #{_forward_impl.1} parent=5 // pred_fallthru
        _
    $region6: #{_forward_impl.1} parent=1 // loop_footer
      %s23 = sadd.s32 1, %s19
    $region7: #{_forward_impl.1} parent=1 // loop_footer_branch
      %18 = sbr.rel target = $region3
    $region8: #{_forward_impl.1} parent=1 // loop_exit
      _
    %2162 = vsyncpa [#allocation3], 1
    %s2163 = scalar_lea.sflag [#allocation3], 1
    %2164 = vsyncpa %s2163, 1
    %2165 = vsyncpa [#allocation6], 1
    %2166 = vsyncpa [#allocation9], 1
    %2167 = vsyncpa [#allocation4], 1
    %s2168 = scalar_lea.sflag [#allocation4], 1
    %2169 = vsyncpa %s2168, 1

</llo_original>
